<compile_context>
chip_gen: v6e
topology: v6e:2x2x1
jax: 0.10.0
libtpu: 0.0.40
codegen_flags: <defaults>
</compile_context>

<pallas_src>
import math
import jax
import jax.numpy as jnp
from jax import lax
from jax.experimental import pallas as pl
from jax.experimental.pallas import tpu as pltpu

# -------------------- small "bert-base"-style config --------------------
B, S, H = 2, 8, 32          # batch, seq, hidden_size
NH, DH = 4, 8               # num heads, head dim (NH * DH == H)
I = 64                      # intermediate (FFN) size
L = 2                       # number of encoder layers
VOCAB = 100
MAX_POS = 16
TYPE_VOCAB = 2
NUM_LABELS = 2
C_PAD = 128                 # lane-dense padded classifier width (>= 128)
LN_EPS = 1e-12


# -------------------- in-kernel helpers (f32 math) --------------------
def _layernorm(x, gamma, beta):
    mean = jnp.mean(x, axis=-1, keepdims=True)
    var = jnp.mean((x - mean) ** 2, axis=-1, keepdims=True)
    return (x - mean) * lax.rsqrt(var + LN_EPS) * gamma + beta


def _gelu(x):
    # TODO(synk): exact erf-GELU replaced with tanh approximation (EUP tanh path).
    c = math.sqrt(2.0 / math.pi)
    return 0.5 * x * (1.0 + jnp.tanh(c * (x + 0.044715 * x * x * x)))


# -------------------- fused kernel: one grid step == one batch element ------
def bert_fused_kernel(x_ref, mask_ref, embg_ref, embb_ref,
                      wq_ref, bq_ref, wk_ref, bk_ref, wv_ref, bv_ref,
                      wo_ref, bo_ref, ln1g_ref, ln1b_ref,
                      w1_ref, b1_ref, w2_ref, b2_ref, ln2g_ref, ln2b_ref,
                      wp_ref, bp_ref, wc_ref, bc_ref,
                      o_ref, x_sc):
    mask = mask_ref[0]                                      # [1, S] additive, over keys
    scale = 1.0 / math.sqrt(DH)

    # embedding LayerNorm (f32), activation carried in VMEM scratch across layers
    x_sc[...] = _layernorm(x_ref[0], embg_ref[...], embb_ref[...])

    @pl.loop(0, L)
    def _(l):
        x = x_sc[...]                                       # [S, H] f32
        xb = x.astype(jnp.bfloat16)

        def proj_t(w_ref, b_ref):
            # W[out, in] contracted with x[S, in] over "in"  ->  [H_out, S]
            return lax.dot_general(w_ref[l], xb, (((1,), (1,)), ((), ())),
                                   preferred_element_type=jnp.float32) + b_ref[l]

        q_t = proj_t(wq_ref, bq_ref)                        # [H, S]
        k_t = proj_t(wk_ref, bk_ref)                        # [H, S]
        v_t = proj_t(wv_ref, bv_ref)                        # [H, S]

        # head-major views; the reshapes split the sublane dim on 8-row tiles (free)
        q3 = jnp.transpose(q_t.reshape(NH, DH, S), (0, 2, 1))   # [NH, S, DH]
        k3t = k_t.reshape(NH, DH, S)                             # [NH, DH, S]
        v3t = v_t.reshape(NH, DH, S)                             # [NH, DH, S]

        # all heads in one batched contraction: scores [NH, S, S]
        scores = jnp.einsum('hqd,hdk->hqk',
                            q3.astype(jnp.bfloat16), k3t.astype(jnp.bfloat16),
                            preferred_element_type=jnp.float32) * scale
        scores = scores + mask                               # broadcast [1,S] -> [NH,S,S]
        scores = scores - jnp.max(scores, axis=-1, keepdims=True)
        p = jnp.exp(scores)
        p = p * pl.reciprocal(jnp.sum(p, axis=-1, keepdims=True), approx=True)

        # context for all heads, head-major transposed: [NH, DH, S] -> [H, S]
        ctx_t = jnp.einsum('hdk,hqk->hdq',
                           v3t.astype(jnp.bfloat16), p.astype(jnp.bfloat16),
                           preferred_element_type=jnp.float32).reshape(H, S)

        # single output projection for all heads: [S, H]
        attn = lax.dot_general(ctx_t.astype(jnp.bfloat16), wo_ref[l],
                               (((0,), (0,)), ((), ())),
                               preferred_element_type=jnp.float32) + bo_ref[l]

        x1 = _layernorm(x + attn, ln1g_ref[l], ln1b_ref[l])

        hdn = _gelu(jnp.dot(x1.astype(jnp.bfloat16), w1_ref[l],
                            preferred_element_type=jnp.float32) + b1_ref[l])
        ffn = jnp.dot(hdn.astype(jnp.bfloat16), w2_ref[l],
                      preferred_element_type=jnp.float32) + b2_ref[l]
        x_sc[...] = _layernorm(x1 + ffn, ln2g_ref[l], ln2b_ref[l])

    # pooler (first token) + classifier; dropout is identity at inference
    cls = x_sc[0:1, :]                                       # [1, H]
    pooled = jnp.tanh(jnp.dot(cls.astype(jnp.bfloat16), wp_ref[...],
                              preferred_element_type=jnp.float32) + bp_ref[...])
    # lane-dense padded logits row ([1, 128]); wrapper slices to NUM_LABELS
    o_ref[0] = jnp.dot(pooled.astype(jnp.bfloat16), wc_ref[...],
                       preferred_element_type=jnp.float32) + bc_ref[...]


# -------------------- pallas_call wrapper --------------------
def _rep_spec(a):
    nd = a.ndim
    return pl.BlockSpec(a.shape, lambda *_: (0,) * nd)


def bert_for_sequence_classification(params, input_ids,
                                     token_type_ids=None, attention_mask=None):
    if token_type_ids is None:
        token_type_ids = jnp.zeros_like(input_ids)
    if attention_mask is None:
        attention_mask = jnp.ones_like(input_ids)

    # embeddings (gathers are plain-JAX glue; LayerNorm runs inside the kernel)
    pos_ids = jnp.arange(S, dtype=jnp.int32)
    emb = (params["word_emb"][input_ids]
           + params["pos_emb"][pos_ids][None, :, :]
           + params["tok_emb"][token_type_ids])             # [B, S, H] f32

    # BERT extended additive attention mask: (1 - mask) * -10000, shape [B, 1, S]
    ext_mask = ((1.0 - attention_mask.astype(jnp.float32)) * -10000.0).reshape(B, 1, S)

    lp = params["layers"]
    weight_args = [
        params["emb_ln_g"], params["emb_ln_b"],
        lp["wq"], lp["bq"], lp["wk"], lp["bk"], lp["wv"], lp["bv"],
        lp["wo"], lp["bo"], lp["ln1_g"], lp["ln1_b"],
        lp["w1"], lp["b1"], lp["w2"], lp["b2"], lp["ln2_g"], lp["ln2_b"],
        params["pooler_w"], params["pooler_b"],
        params["cls_w_pad"], params["cls_b_pad"],
    ]

    out = pl.pallas_call(
        bert_fused_kernel,
        out_shape=jax.ShapeDtypeStruct((B, 1, C_PAD), jnp.float32),
        grid_spec=pltpu.PrefetchScalarGridSpec(
            num_scalar_prefetch=0, grid=(B,),
            in_specs=[pl.BlockSpec((1, S, H), lambda b: (b, 0, 0)),      # embeddings
                      pl.BlockSpec((1, 1, S), lambda b: (b, 0, 0))]      # additive mask
                     + [_rep_spec(a) for a in weight_args],              # all weights
            out_specs=pl.BlockSpec((1, 1, C_PAD), lambda b: (b, 0, 0)),
            scratch_shapes=[pltpu.VMEM((S, H), jnp.float32)]),
        # NOTE: on v7x, pltpu.CORE_PARALLEL on this batch axis would split the two
        # batch elements across the two TensorCores; "parallel" kept for portability.
        compiler_params=pltpu.CompilerParams(dimension_semantics=("parallel",)),
    )(emb, ext_mask, *weight_args)

    return out[:, 0, :NUM_LABELS]


# -------------------- deterministic parameter init --------------------
def init_params(key):
    std = 0.02  # BERT initializer_range
    ks = iter(jax.random.split(key, 64))
    nrm = lambda shape, s=std: (s * jax.random.normal(next(ks), shape)).astype(jnp.float32)
    zeros = lambda shape: jnp.zeros(shape, jnp.float32)
    ones = lambda shape: jnp.ones(shape, jnp.float32)
    bf = lambda a: a.astype(jnp.bfloat16)     # matmul weights stored bf16

    layers = {
        # Q/K/V weights in [out, in] layout; their biases as columns [H, 1]
        "wq": bf(nrm((L, H, H))), "bq": zeros((L, H, 1)),
        "wk": bf(nrm((L, H, H))), "bk": zeros((L, H, 1)),
        "wv": bf(nrm((L, H, H))), "bv": zeros((L, H, 1)),
        # output / FFN weights in [in, out] layout; biases as rows
        "wo": bf(nrm((L, H, H))), "bo": zeros((L, 1, H)),
        "ln1_g": ones((L, 1, H)), "ln1_b": zeros((L, 1, H)),
        "w1": bf(nrm((L, H, I))), "b1": zeros((L, 1, I)),
        "w2": bf(nrm((L, I, H))), "b2": zeros((L, 1, H)),
        "ln2_g": ones((L, 1, H)), "ln2_b": zeros((L, 1, H)),
    }

    # classifier: nn.init.xavier_normal_ on weight [num_labels, H]; padded lane-dense
    cls_w = nrm((H, NUM_LABELS), math.sqrt(2.0 / (H + NUM_LABELS)))
    cls_w_pad = jnp.zeros((H, C_PAD), jnp.float32).at[:, :NUM_LABELS].set(cls_w)

    return {
        "word_emb": nrm((VOCAB, H)),
        "pos_emb": nrm((MAX_POS, H)),
        "tok_emb": nrm((TYPE_VOCAB, H)),
        "emb_ln_g": ones((1, H)),
        "emb_ln_b": zeros((1, H)),
        "layers": layers,
        "pooler_w": bf(nrm((H, H))),          # [in, out]
        "pooler_b": zeros((1, H)),
        "cls_w_pad": bf(cls_w_pad),           # [in, 128]
        "cls_b_pad": zeros((1, C_PAD)),
    }


if __name__ == "__main__":
    key = jax.random.PRNGKey(0)
    k_param, k_ids, k_mask = jax.random.split(key, 3)

    params = init_params(k_param)
    input_ids = jax.random.randint(k_ids, (B, S), 0, VOCAB, dtype=jnp.int32)
    token_type_ids = jnp.zeros((B, S), jnp.int32)
    # mask out the last two tokens of the second sequence to exercise the mask path
    attention_mask = jnp.ones((B, S), jnp.int32).at[1, -2:].set(0)

    fwd = jax.jit(bert_for_sequence_classification)
    logits = fwd(params, input_ids, token_type_ids, attention_mask)
    logits = jax.block_until_ready(logits)
    assert logits.shape == (B, NUM_LABELS) and logits.dtype == jnp.float32
    assert bool(jnp.all(jnp.isfinite(logits)))
    print("KERNEL_OK")
</pallas_src>

<mosaic_0001>
module attributes {stable_mosaic.version = 11 : i64} {
  func.func @bert_fused_kernel(%arg0: i32, %arg1: memref<1x8x32xf32, #tpu.memory_space<vmem>>, %arg2: memref<1x1x8xf32, #tpu.memory_space<vmem>>, %arg3: memref<1x32xf32, #tpu.memory_space<vmem>>, %arg4: memref<1x32xf32, #tpu.memory_space<vmem>>, %arg5: memref<2x32x32xbf16, #tpu.memory_space<vmem>>, %arg6: memref<2x32x1xf32, #tpu.memory_space<vmem>>, %arg7: memref<2x32x32xbf16, #tpu.memory_space<vmem>>, %arg8: memref<2x32x1xf32, #tpu.memory_space<vmem>>, %arg9: memref<2x32x32xbf16, #tpu.memory_space<vmem>>, %arg10: memref<2x32x1xf32, #tpu.memory_space<vmem>>, %arg11: memref<2x32x32xbf16, #tpu.memory_space<vmem>>, %arg12: memref<2x1x32xf32, #tpu.memory_space<vmem>>, %arg13: memref<2x1x32xf32, #tpu.memory_space<vmem>>, %arg14: memref<2x1x32xf32, #tpu.memory_space<vmem>>, %arg15: memref<2x32x64xbf16, #tpu.memory_space<vmem>>, %arg16: memref<2x1x64xf32, #tpu.memory_space<vmem>>, %arg17: memref<2x64x32xbf16, #tpu.memory_space<vmem>>, %arg18: memref<2x1x32xf32, #tpu.memory_space<vmem>>, %arg19: memref<2x1x32xf32, #tpu.memory_space<vmem>>, %arg20: memref<2x1x32xf32, #tpu.memory_space<vmem>>, %arg21: memref<32x32xbf16, #tpu.memory_space<vmem>>, %arg22: memref<1x32xf32, #tpu.memory_space<vmem>>, %arg23: memref<32x128xbf16, #tpu.memory_space<vmem>>, %arg24: memref<1x128xf32, #tpu.memory_space<vmem>>, %arg25: memref<1x1x128xf32, #tpu.memory_space<vmem>>, %arg26: memref<8x32xf32, #tpu.memory_space<vmem>>) attributes {dimension_semantics = [#tpu.dimension_semantics<parallel>], iteration_bounds = array<i64: 2>, scalar_prefetch = 0 : i64, scratch_operands = 1 : i64, tpu.core_type = #tpu.core_type<tc>, window_params = [{transform_indices = @transform_0, window_bounds = array<i64: 1, 8, 32>}, {transform_indices = @transform_1, window_bounds = array<i64: 1, 1, 8>}, {pipeline_mode = #tpu.pipeline_mode<synchronous>, transform_indices = @transform_2, window_bounds = array<i64: 1, 32>}, {pipeline_mode = #tpu.pipeline_mode<synchronous>, transform_indices = @transform_3, window_bounds = array<i64: 1, 32>}, {pipeline_mode = #tpu.pipeline_mode<synchronous>, transform_indices = @transform_4, window_bounds = array<i64: 2, 32, 32>}, {pipeline_mode = #tpu.pipeline_mode<synchronous>, transform_indices = @transform_5, window_bounds = array<i64: 2, 32, 1>}, {pipeline_mode = #tpu.pipeline_mode<synchronous>, transform_indices = @transform_6, window_bounds = array<i64: 2, 32, 32>}, {pipeline_mode = #tpu.pipeline_mode<synchronous>, transform_indices = @transform_7, window_bounds = array<i64: 2, 32, 1>}, {pipeline_mode = #tpu.pipeline_mode<synchronous>, transform_indices = @transform_8, window_bounds = array<i64: 2, 32, 32>}, {pipeline_mode = #tpu.pipeline_mode<synchronous>, transform_indices = @transform_9, window_bounds = array<i64: 2, 32, 1>}, {pipeline_mode = #tpu.pipeline_mode<synchronous>, transform_indices = @transform_10, window_bounds = array<i64: 2, 32, 32>}, {pipeline_mode = #tpu.pipeline_mode<synchronous>, transform_indices = @transform_11, window_bounds = array<i64: 2, 1, 32>}, {pipeline_mode = #tpu.pipeline_mode<synchronous>, transform_indices = @transform_12, window_bounds = array<i64: 2, 1, 32>}, {pipeline_mode = #tpu.pipeline_mode<synchronous>, transform_indices = @transform_13, window_bounds = array<i64: 2, 1, 32>}, {pipeline_mode = #tpu.pipeline_mode<synchronous>, transform_indices = @transform_14, window_bounds = array<i64: 2, 32, 64>}, {pipeline_mode = #tpu.pipeline_mode<synchronous>, transform_indices = @transform_15, window_bounds = array<i64: 2, 1, 64>}, {pipeline_mode = #tpu.pipeline_mode<synchronous>, transform_indices = @transform_16, window_bounds = array<i64: 2, 64, 32>}, {pipeline_mode = #tpu.pipeline_mode<synchronous>, transform_indices = @transform_17, window_bounds = array<i64: 2, 1, 32>}, {pipeline_mode = #tpu.pipeline_mode<synchronous>, transform_indices = @transform_18, window_bounds = array<i64: 2, 1, 32>}, {pipeline_mode = #tpu.pipeline_mode<synchronous>, transform_indices = @transform_19, window_bounds = array<i64: 2, 1, 32>}, {pipeline_mode = #tpu.pipeline_mode<synchronous>, transform_indices = @transform_20, window_bounds = array<i64: 32, 32>}, {pipeline_mode = #tpu.pipeline_mode<synchronous>, transform_indices = @transform_21, window_bounds = array<i64: 1, 32>}, {pipeline_mode = #tpu.pipeline_mode<synchronous>, transform_indices = @transform_22, window_bounds = array<i64: 32, 128>}, {pipeline_mode = #tpu.pipeline_mode<synchronous>, transform_indices = @transform_23, window_bounds = array<i64: 1, 128>}, {transform_indices = @transform_24, window_bounds = array<i64: 1, 1, 128>}]} {
    %c0 = arith.constant 0 : index
    %c0_0 = arith.constant 0 : index
    %c0_1 = arith.constant 0 : index
    %0 = vector.load %arg2[%c0, %c0_0, %c0_1] : memref<1x1x8xf32, #tpu.memory_space<vmem>>, vector<1x1x8xf32>
    %1 = vector.shape_cast %0 : vector<1x1x8xf32> to vector<1x8xf32>
    %c0_2 = arith.constant 0 : index
    %c0_3 = arith.constant 0 : index
    %c0_4 = arith.constant 0 : index
    %2 = vector.load %arg1[%c0_2, %c0_3, %c0_4] : memref<1x8x32xf32, #tpu.memory_space<vmem>>, vector<1x8x32xf32>
    %3 = vector.shape_cast %2 : vector<1x8x32xf32> to vector<8x32xf32>
    %c0_5 = arith.constant 0 : index
    %c0_6 = arith.constant 0 : index
    %4 = vector.load %arg3[%c0_5, %c0_6] : memref<1x32xf32, #tpu.memory_space<vmem>>, vector<1x32xf32>
    %c0_7 = arith.constant 0 : index
    %c0_8 = arith.constant 0 : index
    %5 = vector.load %arg4[%c0_7, %c0_8] : memref<1x32xf32, #tpu.memory_space<vmem>>, vector<1x32xf32>
    %cst = arith.constant dense<0.000000e+00> : vector<8xf32>
    %6 = vector.multi_reduction <add>, %3, %cst [1] : vector<8x32xf32> to vector<8xf32>
    %7 = vector.shape_cast %6 : vector<8xf32> to vector<8x1xf32>
    %cst_9 = arith.constant 3.200000e+01 : f32
    %8 = vector.broadcast %cst_9 : f32 to vector<8x1xf32>
    %9 = arith.divf %7, %8 : vector<8x1xf32>
    %10 = vector.broadcast %9 : vector<8x1xf32> to vector<8x32xf32>
    %11 = arith.subf %3, %10 : vector<8x32xf32>
    %12 = arith.mulf %11, %11 : vector<8x32xf32>
    %cst_10 = arith.constant dense<0.000000e+00> : vector<8xf32>
    %13 = vector.multi_reduction <add>, %12, %cst_10 [1] : vector<8x32xf32> to vector<8xf32>
    %14 = vector.shape_cast %13 : vector<8xf32> to vector<8x1xf32>
    %cst_11 = arith.constant 3.200000e+01 : f32
    %15 = vector.broadcast %cst_11 : f32 to vector<8x1xf32>
    %16 = arith.divf %14, %15 : vector<8x1xf32>
    %17 = vector.broadcast %9 : vector<8x1xf32> to vector<8x32xf32>
    %18 = arith.subf %3, %17 : vector<8x32xf32>
    %cst_12 = arith.constant 9.99999996E-13 : f32
    %19 = vector.broadcast %cst_12 : f32 to vector<8x1xf32>
    %20 = arith.addf %16, %19 : vector<8x1xf32>
    %21 = math.rsqrt %20 : vector<8x1xf32>
    %22 = vector.broadcast %21 : vector<8x1xf32> to vector<8x32xf32>
    %23 = arith.mulf %18, %22 : vector<8x32xf32>
    %24 = vector.broadcast %4 : vector<1x32xf32> to vector<8x32xf32>
    %25 = arith.mulf %23, %24 : vector<8x32xf32>
    %26 = vector.broadcast %5 : vector<1x32xf32> to vector<8x32xf32>
    %27 = arith.addf %25, %26 : vector<8x32xf32>
    %c0_13 = arith.constant 0 : index
    %c0_14 = arith.constant 0 : index
    %28 = vector.load %arg26[%c0_13, %c0_14] : memref<8x32xf32, #tpu.memory_space<vmem>>, vector<8x32xf32>
    tpu.vector_store %arg26[%c0_13, %c0_14], %27 {strides = array<i32>} : memref<8x32xf32, #tpu.memory_space<vmem>>, vector<8x32xf32>,
    %c0_i32 = arith.constant 0 : i32
    %c2_i32 = arith.constant 2 : i32
    %29 = arith.addi %c0_i32, %c2_i32 : i32
    %c1_i32 = arith.constant 1 : i32
    scf.for %arg27 = %c0_i32 to %29 step %c1_i32  : i32 {
      %c1_i32_31 = arith.constant 1 : i32
      %45 = arith.muli %arg27, %c1_i32_31 : i32
      %c0_i32_32 = arith.constant 0 : i32
      %46 = arith.addi %c0_i32_32, %45 : i32
      %c0_33 = arith.constant 0 : index
      %c0_34 = arith.constant 0 : index
      %47 = vector.load %arg26[%c0_33, %c0_34] : memref<8x32xf32, #tpu.memory_space<vmem>>, vector<8x32xf32>
      %48 = arith.truncf %47 : vector<8x32xf32> to vector<8x32xbf16>
      %49 = arith.index_cast %46 : i32 to index
      %c0_35 = arith.constant 0 : index
      %c0_36 = arith.constant 0 : index
      %50 = vector.load %arg5[%49, %c0_35, %c0_36] : memref<2x32x32xbf16, #tpu.memory_space<vmem>>, vector<1x32x32xbf16>
      %51 = vector.shape_cast %50 : vector<1x32x32xbf16> to vector<32x32xbf16>
      %cst_37 = arith.constant dense<0.000000e+00> : vector<32x8xf32>
      %52 = tpu.matmul %51, %48, %cst_37 {dimension_numbers = #tpu.dot_dimension_numbers<[1], [1], [0], [0], [0, 0, 1, 0], [], []>} : vector<32x32xbf16>, vector<8x32xbf16>, vector<32x8xf32> -> vector<32x8xf32>
      %53 = arith.index_cast %46 : i32 to index
      %c0_38 = arith.constant 0 : index
      %c0_39 = arith.constant 0 : index
      %54 = vector.load %arg6[%53, %c0_38, %c0_39] : memref<2x32x1xf32, #tpu.memory_space<vmem>>, vector<1x32x1xf32>
      %55 = vector.shape_cast %54 : vector<1x32x1xf32> to vector<32x1xf32>
      %56 = vector.broadcast %55 : vector<32x1xf32> to vector<32x8xf32>
      %57 = arith.addf %52, %56 : vector<32x8xf32>
      %58 = arith.index_cast %46 : i32 to index
      %c0_40 = arith.constant 0 : index
      %c0_41 = arith.constant 0 : index
      %59 = vector.load %arg7[%58, %c0_40, %c0_41] : memref<2x32x32xbf16, #tpu.memory_space<vmem>>, vector<1x32x32xbf16>
      %60 = vector.shape_cast %59 : vector<1x32x32xbf16> to vector<32x32xbf16>
      %cst_42 = arith.constant dense<0.000000e+00> : vector<32x8xf32>
      %61 = tpu.matmul %60, %48, %cst_42 {dimension_numbers = #tpu.dot_dimension_numbers<[1], [1], [0], [0], [0, 0, 1, 0], [], []>} : vector<32x32xbf16>, vector<8x32xbf16>, vector<32x8xf32> -> vector<32x8xf32>
      %62 = arith.index_cast %46 : i32 to index
      %c0_43 = arith.constant 0 : index
      %c0_44 = arith.constant 0 : index
      %63 = vector.load %arg8[%62, %c0_43, %c0_44] : memref<2x32x1xf32, #tpu.memory_space<vmem>>, vector<1x32x1xf32>
      %64 = vector.shape_cast %63 : vector<1x32x1xf32> to vector<32x1xf32>
      %65 = vector.broadcast %64 : vector<32x1xf32> to vector<32x8xf32>
      %66 = arith.addf %61, %65 : vector<32x8xf32>
      %67 = arith.index_cast %46 : i32 to index
      %c0_45 = arith.constant 0 : index
      %c0_46 = arith.constant 0 : index
      %68 = vector.load %arg9[%67, %c0_45, %c0_46] : memref<2x32x32xbf16, #tpu.memory_space<vmem>>, vector<1x32x32xbf16>
      %69 = vector.shape_cast %68 : vector<1x32x32xbf16> to vector<32x32xbf16>
      %cst_47 = arith.constant dense<0.000000e+00> : vector<32x8xf32>
      %70 = tpu.matmul %69, %48, %cst_47 {dimension_numbers = #tpu.dot_dimension_numbers<[1], [1], [0], [0], [0, 0, 1, 0], [], []>} : vector<32x32xbf16>, vector<8x32xbf16>, vector<32x8xf32> -> vector<32x8xf32>
      %71 = arith.index_cast %46 : i32 to index
      %c0_48 = arith.constant 0 : index
      %c0_49 = arith.constant 0 : index
      %72 = vector.load %arg10[%71, %c0_48, %c0_49] : memref<2x32x1xf32, #tpu.memory_space<vmem>>, vector<1x32x1xf32>
      %73 = vector.shape_cast %72 : vector<1x32x1xf32> to vector<32x1xf32>
      %74 = vector.broadcast %73 : vector<32x1xf32> to vector<32x8xf32>
      %75 = arith.addf %70, %74 : vector<32x8xf32>
      %76 = vector.shape_cast %57 : vector<32x8xf32> to vector<4x8x8xf32>
      %77 = tpu.transpose %76, [0, 2, 1] : vector<4x8x8xf32> -> vector<4x8x8xf32>
      %78 = vector.shape_cast %66 : vector<32x8xf32> to vector<4x8x8xf32>
      %79 = vector.shape_cast %75 : vector<32x8xf32> to vector<4x8x8xf32>
      %80 = arith.truncf %77 : vector<4x8x8xf32> to vector<4x8x8xbf16>
      %81 = arith.truncf %78 : vector<4x8x8xf32> to vector<4x8x8xbf16>
      "tpu.trace_start"() <{level = 10 : i32, message = "hqd,hdk->hqk"}> : () -> ()
      %cst_50 = arith.constant dense<0.000000e+00> : vector<4x8x8xf32>
      %82 = tpu.matmul %80, %81, %cst_50 {dimension_numbers = #tpu.dot_dimension_numbers<[2], [1], [1], [2], [0, 0, 0, 1, 1, 2], [0], [0]>} : vector<4x8x8xbf16>, vector<4x8x8xbf16>, vector<4x8x8xf32> -> vector<4x8x8xf32>
      "tpu.trace_stop"() : () -> ()
      %cst_51 = arith.constant 0.353553385 : f32
      %83 = vector.broadcast %cst_51 : f32 to vector<4x8x8xf32>
      %84 = arith.mulf %82, %83 : vector<4x8x8xf32>
      %85 = vector.shape_cast %1 : vector<1x8xf32> to vector<1x1x8xf32>
      %86 = vector.broadcast %85 : vector<1x1x8xf32> to vector<4x8x8xf32>
      %87 = arith.addf %84, %86 : vector<4x8x8xf32>
      %cst_52 = arith.constant dense<0xFF800000> : vector<4x8xf32>
      %88 = vector.multi_reduction <maximumf>, %87, %cst_52 [2] : vector<4x8x8xf32> to vector<4x8xf32>
      %89 = vector.shape_cast %88 : vector<4x8xf32> to vector<4x8x1xf32>
      %90 = vector.broadcast %89 : vector<4x8x1xf32> to vector<4x8x8xf32>
      %91 = arith.subf %87, %90 : vector<4x8x8xf32>
      %92 = math.exp %91 : vector<4x8x8xf32>
      %cst_53 = arith.constant dense<0.000000e+00> : vector<4x8xf32>
      %93 = vector.multi_reduction <add>, %92, %cst_53 [2] : vector<4x8x8xf32> to vector<4x8xf32>
      %94 = vector.shape_cast %93 : vector<4x8xf32> to vector<4x8x1xf32>
      %95 = tpu.reciprocal %94 {approx = true} : vector<4x8x1xf32> -> vector<4x8x1xf32>
      %96 = vector.broadcast %95 : vector<4x8x1xf32> to vector<4x8x8xf32>
      %97 = arith.mulf %92, %96 : vector<4x8x8xf32>
      %98 = arith.truncf %79 : vector<4x8x8xf32> to vector<4x8x8xbf16>
      %99 = arith.truncf %97 : vector<4x8x8xf32> to vector<4x8x8xbf16>
      "tpu.trace_start"() <{level = 10 : i32, message = "hdk,hqk->hdq"}> : () -> ()
      %cst_54 = arith.constant dense<0.000000e+00> : vector<4x8x8xf32>
      %100 = tpu.matmul %98, %99, %cst_54 {dimension_numbers = #tpu.dot_dimension_numbers<[2], [2], [1], [1], [0, 0, 0, 1, 1, 1], [0], [0]>} : vector<4x8x8xbf16>, vector<4x8x8xbf16>, vector<4x8x8xf32> -> vector<4x8x8xf32>
      "tpu.trace_stop"() : () -> ()
      %101 = vector.shape_cast %100 : vector<4x8x8xf32> to vector<32x8xf32>
      %102 = arith.truncf %101 : vector<32x8xf32> to vector<32x8xbf16>
      %103 = arith.index_cast %46 : i32 to index
      %c0_55 = arith.constant 0 : index
      %c0_56 = arith.constant 0 : index
      %104 = vector.load %arg11[%103, %c0_55, %c0_56] : memref<2x32x32xbf16, #tpu.memory_space<vmem>>, vector<1x32x32xbf16>
      %105 = vector.shape_cast %104 : vector<1x32x32xbf16> to vector<32x32xbf16>
      %cst_57 = arith.constant dense<0.000000e+00> : vector<8x32xf32>
      %106 = tpu.matmul %102, %105, %cst_57 {dimension_numbers = #tpu.dot_dimension_numbers<[0], [0], [1], [1], [0, 1, 1, 1], [], []>} : vector<32x8xbf16>, vector<32x32xbf16>, vector<8x32xf32> -> vector<8x32xf32>
      %107 = arith.index_cast %46 : i32 to index
      %c0_58 = arith.constant 0 : index
      %c0_59 = arith.constant 0 : index
      %108 = vector.load %arg12[%107, %c0_58, %c0_59] : memref<2x1x32xf32, #tpu.memory_space<vmem>>, vector<1x1x32xf32>
      %109 = vector.shape_cast %108 : vector<1x1x32xf32> to vector<1x32xf32>
      %110 = vector.broadcast %109 : vector<1x32xf32> to vector<8x32xf32>
      %111 = arith.addf %106, %110 : vector<8x32xf32>
      %112 = arith.addf %47, %111 : vector<8x32xf32>
      %113 = arith.index_cast %46 : i32 to index
      %c0_60 = arith.constant 0 : index
      %c0_61 = arith.constant 0 : index
      %114 = vector.load %arg13[%113, %c0_60, %c0_61] : memref<2x1x32xf32, #tpu.memory_space<vmem>>, vector<1x1x32xf32>
      %115 = vector.shape_cast %114 : vector<1x1x32xf32> to vector<1x32xf32>
      %116 = arith.index_cast %46 : i32 to index
      %c0_62 = arith.constant 0 : index
      %c0_63 = arith.constant 0 : index
      %117 = vector.load %arg14[%116, %c0_62, %c0_63] : memref<2x1x32xf32, #tpu.memory_space<vmem>>, vector<1x1x32xf32>
      %118 = vector.shape_cast %117 : vector<1x1x32xf32> to vector<1x32xf32>
      %cst_64 = arith.constant dense<0.000000e+00> : vector<8xf32>
      %119 = vector.multi_reduction <add>, %112, %cst_64 [1] : vector<8x32xf32> to vector<8xf32>
      %120 = vector.shape_cast %119 : vector<8xf32> to vector<8x1xf32>
      %cst_65 = arith.constant 3.200000e+01 : f32
      %121 = vector.broadcast %cst_65 : f32 to vector<8x1xf32>
      %122 = arith.divf %120, %121 : vector<8x1xf32>
      %123 = vector.broadcast %122 : vector<8x1xf32> to vector<8x32xf32>
      %124 = arith.subf %112, %123 : vector<8x32xf32>
      %125 = arith.mulf %124, %124 : vector<8x32xf32>
      %cst_66 = arith.constant dense<0.000000e+00> : vector<8xf32>
      %126 = vector.multi_reduction <add>, %125, %cst_66 [1] : vector<8x32xf32> to vector<8xf32>
      %127 = vector.shape_cast %126 : vector<8xf32> to vector<8x1xf32>
      %cst_67 = arith.constant 3.200000e+01 : f32
      %128 = vector.broadcast %cst_67 : f32 to vector<8x1xf32>
      %129 = arith.divf %127, %128 : vector<8x1xf32>
      %130 = vector.broadcast %122 : vector<8x1xf32> to vector<8x32xf32>
      %131 = arith.subf %112, %130 : vector<8x32xf32>
      %cst_68 = arith.constant 9.99999996E-13 : f32
      %132 = vector.broadcast %cst_68 : f32 to vector<8x1xf32>
      %133 = arith.addf %129, %132 : vector<8x1xf32>
      %134 = math.rsqrt %133 : vector<8x1xf32>
      %135 = vector.broadcast %134 : vector<8x1xf32> to vector<8x32xf32>
      %136 = arith.mulf %131, %135 : vector<8x32xf32>
      %137 = vector.broadcast %115 : vector<1x32xf32> to vector<8x32xf32>
      %138 = arith.mulf %136, %137 : vector<8x32xf32>
      %139 = vector.broadcast %118 : vector<1x32xf32> to vector<8x32xf32>
      %140 = arith.addf %138, %139 : vector<8x32xf32>
      %141 = arith.truncf %140 : vector<8x32xf32> to vector<8x32xbf16>
      %142 = arith.index_cast %46 : i32 to index
      %c0_69 = arith.constant 0 : index
      %c0_70 = arith.constant 0 : index
      %143 = vector.load %arg15[%142, %c0_69, %c0_70] : memref<2x32x64xbf16, #tpu.memory_space<vmem>>, vector<1x32x64xbf16>
      %144 = vector.shape_cast %143 : vector<1x32x64xbf16> to vector<32x64xbf16>
      %cst_71 = arith.constant dense<0.000000e+00> : vector<8x64xf32>
      %145 = tpu.matmul %141, %144, %cst_71 {dimension_numbers = #tpu.dot_dimension_numbers<[1], [0], [0], [1], [0, 0, 1, 1], [], []>} : vector<8x32xbf16>, vector<32x64xbf16>, vector<8x64xf32> -> vector<8x64xf32>
      %146 = arith.index_cast %46 : i32 to index
      %c0_72 = arith.constant 0 : index
      %c0_73 = arith.constant 0 : index
      %147 = vector.load %arg16[%146, %c0_72, %c0_73] : memref<2x1x64xf32, #tpu.memory_space<vmem>>, vector<1x1x64xf32>
      %148 = vector.shape_cast %147 : vector<1x1x64xf32> to vector<1x64xf32>
      %149 = vector.broadcast %148 : vector<1x64xf32> to vector<8x64xf32>
      %150 = arith.addf %145, %149 : vector<8x64xf32>
      %cst_74 = arith.constant 5.000000e-01 : f32
      %151 = vector.broadcast %cst_74 : f32 to vector<8x64xf32>
      %152 = arith.mulf %151, %150 : vector<8x64xf32>
      %cst_75 = arith.constant 4.471500e-02 : f32
      %153 = vector.broadcast %cst_75 : f32 to vector<8x64xf32>
      %154 = arith.mulf %153, %150 : vector<8x64xf32>
      %155 = arith.mulf %154, %150 : vector<8x64xf32>
      %156 = arith.mulf %155, %150 : vector<8x64xf32>
      %157 = arith.addf %150, %156 : vector<8x64xf32>
      %cst_76 = arith.constant 0.797884583 : f32
      %158 = vector.broadcast %cst_76 : f32 to vector<8x64xf32>
      %159 = arith.mulf %158, %157 : vector<8x64xf32>
      %160 = math.tanh %159 : vector<8x64xf32>
      %cst_77 = arith.constant 1.000000e+00 : f32
      %161 = vector.broadcast %cst_77 : f32 to vector<8x64xf32>
      %162 = arith.addf %161, %160 : vector<8x64xf32>
      %163 = arith.mulf %152, %162 : vector<8x64xf32>
      %164 = arith.truncf %163 : vector<8x64xf32> to vector<8x64xbf16>
      %165 = arith.index_cast %46 : i32 to index
      %c0_78 = arith.constant 0 : index
      %c0_79 = arith.constant 0 : index
      %166 = vector.load %arg17[%165, %c0_78, %c0_79] : memref<2x64x32xbf16, #tpu.memory_space<vmem>>, vector<1x64x32xbf16>
      %167 = vector.shape_cast %166 : vector<1x64x32xbf16> to vector<64x32xbf16>
      %cst_80 = arith.constant dense<0.000000e+00> : vector<8x32xf32>
      %168 = tpu.matmul %164, %167, %cst_80 {dimension_numbers = #tpu.dot_dimension_numbers<[1], [0], [0], [1], [0, 0, 1, 1], [], []>} : vector<8x64xbf16>, vector<64x32xbf16>, vector<8x32xf32> -> vector<8x32xf32>
      %169 = arith.index_cast %46 : i32 to index
      %c0_81 = arith.constant 0 : index
      %c0_82 = arith.constant 0 : index
      %170 = vector.load %arg18[%169, %c0_81, %c0_82] : memref<2x1x32xf32, #tpu.memory_space<vmem>>, vector<1x1x32xf32>
      %171 = vector.shape_cast %170 : vector<1x1x32xf32> to vector<1x32xf32>
      %172 = vector.broadcast %171 : vector<1x32xf32> to vector<8x32xf32>
      %173 = arith.addf %168, %172 : vector<8x32xf32>
      %174 = arith.addf %140, %173 : vector<8x32xf32>
      %175 = arith.index_cast %46 : i32 to index
      %c0_83 = arith.constant 0 : index
      %c0_84 = arith.constant 0 : index
      %176 = vector.load %arg19[%175, %c0_83, %c0_84] : memref<2x1x32xf32, #tpu.memory_space<vmem>>, vector<1x1x32xf32>
      %177 = vector.shape_cast %176 : vector<1x1x32xf32> to vector<1x32xf32>
      %178 = arith.index_cast %46 : i32 to index
      %c0_85 = arith.constant 0 : index
      %c0_86 = arith.constant 0 : index
      %179 = vector.load %arg20[%178, %c0_85, %c0_86] : memref<2x1x32xf32, #tpu.memory_space<vmem>>, vector<1x1x32xf32>
      %180 = vector.shape_cast %179 : vector<1x1x32xf32> to vector<1x32xf32>
      %cst_87 = arith.constant dense<0.000000e+00> : vector<8xf32>
      %181 = vector.multi_reduction <add>, %174, %cst_87 [1] : vector<8x32xf32> to vector<8xf32>
      %182 = vector.shape_cast %181 : vector<8xf32> to vector<8x1xf32>
      %cst_88 = arith.constant 3.200000e+01 : f32
      %183 = vector.broadcast %cst_88 : f32 to vector<8x1xf32>
      %184 = arith.divf %182, %183 : vector<8x1xf32>
      %185 = vector.broadcast %184 : vector<8x1xf32> to vector<8x32xf32>
      %186 = arith.subf %174, %185 : vector<8x32xf32>
      %187 = arith.mulf %186, %186 : vector<8x32xf32>
      %cst_89 = arith.constant dense<0.000000e+00> : vector<8xf32>
      %188 = vector.multi_reduction <add>, %187, %cst_89 [1] : vector<8x32xf32> to vector<8xf32>
      %189 = vector.shape_cast %188 : vector<8xf32> to vector<8x1xf32>
      %cst_90 = arith.constant 3.200000e+01 : f32
      %190 = vector.broadcast %cst_90 : f32 to vector<8x1xf32>
      %191 = arith.divf %189, %190 : vector<8x1xf32>
      %192 = vector.broadcast %184 : vector<8x1xf32> to vector<8x32xf32>
      %193 = arith.subf %174, %192 : vector<8x32xf32>
      %cst_91 = arith.constant 9.99999996E-13 : f32
      %194 = vector.broadcast %cst_91 : f32 to vector<8x1xf32>
      %195 = arith.addf %191, %194 : vector<8x1xf32>
      %196 = math.rsqrt %195 : vector<8x1xf32>
      %197 = vector.broadcast %196 : vector<8x1xf32> to vector<8x32xf32>
      %198 = arith.mulf %193, %197 : vector<8x32xf32>
      %199 = vector.broadcast %177 : vector<1x32xf32> to vector<8x32xf32>
      %200 = arith.mulf %198, %199 : vector<8x32xf32>
      %201 = vector.broadcast %180 : vector<1x32xf32> to vector<8x32xf32>
      %202 = arith.addf %200, %201 : vector<8x32xf32>
      %c0_92 = arith.constant 0 : index
      %c0_93 = arith.constant 0 : index
      %203 = vector.load %arg26[%c0_92, %c0_93] : memref<8x32xf32, #tpu.memory_space<vmem>>, vector<8x32xf32>
      tpu.vector_store %arg26[%c0_92, %c0_93], %202 {strides = array<i32>} : memref<8x32xf32, #tpu.memory_space<vmem>>, vector<8x32xf32>,
    }
    %c2_i32_15 = arith.constant 2 : i32
    %c0_16 = arith.constant 0 : index
    %c0_17 = arith.constant 0 : index
    %30 = vector.load %arg26[%c0_16, %c0_17] : memref<8x32xf32, #tpu.memory_space<vmem>>, vector<1x32xf32>
    %31 = arith.truncf %30 : vector<1x32xf32> to vector<1x32xbf16>
    %c0_18 = arith.constant 0 : index
    %c0_19 = arith.constant 0 : index
    %32 = vector.load %arg21[%c0_18, %c0_19] : memref<32x32xbf16, #tpu.memory_space<vmem>>, vector<32x32xbf16>
    %cst_20 = arith.constant dense<0.000000e+00> : vector<1x32xf32>
    %33 = tpu.matmul %31, %32, %cst_20 {dimension_numbers = #tpu.dot_dimension_numbers<[1], [0], [0], [1], [0, 0, 1, 1], [], []>} : vector<1x32xbf16>, vector<32x32xbf16>, vector<1x32xf32> -> vector<1x32xf32>
    %c0_21 = arith.constant 0 : index
    %c0_22 = arith.constant 0 : index
    %34 = vector.load %arg22[%c0_21, %c0_22] : memref<1x32xf32, #tpu.memory_space<vmem>>, vector<1x32xf32>
    %35 = arith.addf %33, %34 : vector<1x32xf32>
    %36 = math.tanh %35 : vector<1x32xf32>
    %37 = arith.truncf %36 : vector<1x32xf32> to vector<1x32xbf16>
    %c0_23 = arith.constant 0 : index
    %c0_24 = arith.constant 0 : index
    %38 = vector.load %arg23[%c0_23, %c0_24] : memref<32x128xbf16, #tpu.memory_space<vmem>>, vector<32x128xbf16>
    %cst_25 = arith.constant dense<0.000000e+00> : vector<1x128xf32>
    %39 = tpu.matmul %37, %38, %cst_25 {dimension_numbers = #tpu.dot_dimension_numbers<[1], [0], [0], [1], [0, 0, 1, 1], [], []>} : vector<1x32xbf16>, vector<32x128xbf16>, vector<1x128xf32> -> vector<1x128xf32>
    %c0_26 = arith.constant 0 : index
    %c0_27 = arith.constant 0 : index
    %40 = vector.load %arg24[%c0_26, %c0_27] : memref<1x128xf32, #tpu.memory_space<vmem>>, vector<1x128xf32>
    %41 = arith.addf %39, %40 : vector<1x128xf32>
    %c0_28 = arith.constant 0 : index
    %c0_29 = arith.constant 0 : index
    %c0_30 = arith.constant 0 : index
    %42 = vector.load %arg25[%c0_28, %c0_29, %c0_30] : memref<1x1x128xf32, #tpu.memory_space<vmem>>, vector<1x1x128xf32>
    %43 = vector.shape_cast %42 : vector<1x1x128xf32> to vector<1x128xf32>
    %44 = vector.shape_cast %41 : vector<1x128xf32> to vector<1x1x128xf32>
    tpu.vector_store %arg25[%c0_28, %c0_29, %c0_30], %44 {strides = array<i32>} : memref<1x1x128xf32, #tpu.memory_space<vmem>>, vector<1x1x128xf32>,
    return
  }
  func.func @transform_0(%arg0: i32) -> (i32, i32, i32) {
    %c0_i32 = arith.constant 0 : i32
    %c0_i32_0 = arith.constant 0 : i32
    %c0_i32_1 = arith.constant 0 : i32
    return %arg0, %c0_i32, %c0_i32_0 : i32, i32, i32
  }
  func.func @transform_1(%arg0: i32) -> (i32, i32, i32) {
    %c0_i32 = arith.constant 0 : i32
    %c0_i32_0 = arith.constant 0 : i32
    %c0_i32_1 = arith.constant 0 : i32
    return %arg0, %c0_i32, %c0_i32_0 : i32, i32, i32
  }
  func.func @transform_2(%arg0: i32) -> (i32, i32) {
    %c0_i32 = arith.constant 0 : i32
    %c0_i32_0 = arith.constant 0 : i32
    %c0_i32_1 = arith.constant 0 : i32
    return %c0_i32, %c0_i32_0 : i32, i32
  }
  func.func @transform_3(%arg0: i32) -> (i32, i32) {
    %c0_i32 = arith.constant 0 : i32
    %c0_i32_0 = arith.constant 0 : i32
    %c0_i32_1 = arith.constant 0 : i32
    return %c0_i32, %c0_i32_0 : i32, i32
  }
  func.func @transform_4(%arg0: i32) -> (i32, i32, i32) {
    %c0_i32 = arith.constant 0 : i32
    %c0_i32_0 = arith.constant 0 : i32
    %c0_i32_1 = arith.constant 0 : i32
    %c0_i32_2 = arith.constant 0 : i32
    return %c0_i32, %c0_i32_0, %c0_i32_1 : i32, i32, i32
  }
  func.func @transform_5(%arg0: i32) -> (i32, i32, i32) {
    %c0_i32 = arith.constant 0 : i32
    %c0_i32_0 = arith.constant 0 : i32
    %c0_i32_1 = arith.constant 0 : i32
    %c0_i32_2 = arith.constant 0 : i32
    return %c0_i32, %c0_i32_0, %c0_i32_1 : i32, i32, i32
  }
  func.func @transform_6(%arg0: i32) -> (i32, i32, i32) {
    %c0_i32 = arith.constant 0 : i32
    %c0_i32_0 = arith.constant 0 : i32
    %c0_i32_1 = arith.constant 0 : i32
    %c0_i32_2 = arith.constant 0 : i32
    return %c0_i32, %c0_i32_0, %c0_i32_1 : i32, i32, i32
  }
  func.func @transform_7(%arg0: i32) -> (i32, i32, i32) {
    %c0_i32 = arith.constant 0 : i32
    %c0_i32_0 = arith.constant 0 : i32
    %c0_i32_1 = arith.constant 0 : i32
    %c0_i32_2 = arith.constant 0 : i32
    return %c0_i32, %c0_i32_0, %c0_i32_1 : i32, i32, i32
  }
  func.func @transform_8(%arg0: i32) -> (i32, i32, i32) {
    %c0_i32 = arith.constant 0 : i32
    %c0_i32_0 = arith.constant 0 : i32
    %c0_i32_1 = arith.constant 0 : i32
    %c0_i32_2 = arith.constant 0 : i32
    return %c0_i32, %c0_i32_0, %c0_i32_1 : i32, i32, i32
  }
  func.func @transform_9(%arg0: i32) -> (i32, i32, i32) {
    %c0_i32 = arith.constant 0 : i32
    %c0_i32_0 = arith.constant 0 : i32
    %c0_i32_1 = arith.constant 0 : i32
    %c0_i32_2 = arith.constant 0 : i32
    return %c0_i32, %c0_i32_0, %c0_i32_1 : i32, i32, i32
  }
  func.func @transform_10(%arg0: i32) -> (i32, i32, i32) {
    %c0_i32 = arith.constant 0 : i32
    %c0_i32_0 = arith.constant 0 : i32
    %c0_i32_1 = arith.constant 0 : i32
    %c0_i32_2 = arith.constant 0 : i32
    return %c0_i32, %c0_i32_0, %c0_i32_1 : i32, i32, i32
  }
  func.func @transform_11(%arg0: i32) -> (i32, i32, i32) {
    %c0_i32 = arith.constant 0 : i32
    %c0_i32_0 = arith.constant 0 : i32
    %c0_i32_1 = arith.constant 0 : i32
    %c0_i32_2 = arith.constant 0 : i32
    return %c0_i32, %c0_i32_0, %c0_i32_1 : i32, i32, i32
  }
  func.func @transform_12(%arg0: i32) -> (i32, i32, i32) {
    %c0_i32 = arith.constant 0 : i32
    %c0_i32_0 = arith.constant 0 : i32
    %c0_i32_1 = arith.constant 0 : i32
    %c0_i32_2 = arith.constant 0 : i32
    return %c0_i32, %c0_i32_0, %c0_i32_1 : i32, i32, i32
  }
  func.func @transform_13(%arg0: i32) -> (i32, i32, i32) {
    %c0_i32 = arith.constant 0 : i32
    %c0_i32_0 = arith.constant 0 : i32
    %c0_i32_1 = arith.constant 0 : i32
    %c0_i32_2 = arith.constant 0 : i32
    return %c0_i32, %c0_i32_0, %c0_i32_1 : i32, i32, i32
  }
  func.func @transform_14(%arg0: i32) -> (i32, i32, i32) {
    %c0_i32 = arith.constant 0 : i32
    %c0_i32_0 = arith.constant 0 : i32
    %c0_i32_1 = arith.constant 0 : i32
    %c0_i32_2 = arith.constant 0 : i32
    return %c0_i32, %c0_i32_0, %c0_i32_1 : i32, i32, i32
  }
  func.func @transform_15(%arg0: i32) -> (i32, i32, i32) {
    %c0_i32 = arith.constant 0 : i32
    %c0_i32_0 = arith.constant 0 : i32
    %c0_i32_1 = arith.constant 0 : i32
    %c0_i32_2 = arith.constant 0 : i32
    return %c0_i32, %c0_i32_0, %c0_i32_1 : i32, i32, i32
  }
  func.func @transform_16(%arg0: i32) -> (i32, i32, i32) {
    %c0_i32 = arith.constant 0 : i32
    %c0_i32_0 = arith.constant 0 : i32
    %c0_i32_1 = arith.constant 0 : i32
    %c0_i32_2 = arith.constant 0 : i32
    return %c0_i32, %c0_i32_0, %c0_i32_1 : i32, i32, i32
  }
  func.func @transform_17(%arg0: i32) -> (i32, i32, i32) {
    %c0_i32 = arith.constant 0 : i32
    %c0_i32_0 = arith.constant 0 : i32
    %c0_i32_1 = arith.constant 0 : i32
    %c0_i32_2 = arith.constant 0 : i32
    return %c0_i32, %c0_i32_0, %c0_i32_1 : i32, i32, i32
  }
  func.func @transform_18(%arg0: i32) -> (i32, i32, i32) {
    %c0_i32 = arith.constant 0 : i32
    %c0_i32_0 = arith.constant 0 : i32
    %c0_i32_1 = arith.constant 0 : i32
    %c0_i32_2 = arith.constant 0 : i32
    return %c0_i32, %c0_i32_0, %c0_i32_1 : i32, i32, i32
  }
  func.func @transform_19(%arg0: i32) -> (i32, i32, i32) {
    %c0_i32 = arith.constant 0 : i32
    %c0_i32_0 = arith.constant 0 : i32
    %c0_i32_1 = arith.constant 0 : i32
    %c0_i32_2 = arith.constant 0 : i32
    return %c0_i32, %c0_i32_0, %c0_i32_1 : i32, i32, i32
  }
  func.func @transform_20(%arg0: i32) -> (i32, i32) {
    %c0_i32 = arith.constant 0 : i32
    %c0_i32_0 = arith.constant 0 : i32
    %c0_i32_1 = arith.constant 0 : i32
    return %c0_i32, %c0_i32_0 : i32, i32
  }
  func.func @transform_21(%arg0: i32) -> (i32, i32) {
    %c0_i32 = arith.constant 0 : i32
    %c0_i32_0 = arith.constant 0 : i32
    %c0_i32_1 = arith.constant 0 : i32
    return %c0_i32, %c0_i32_0 : i32, i32
  }
  func.func @transform_22(%arg0: i32) -> (i32, i32) {
    %c0_i32 = arith.constant 0 : i32
    %c0_i32_0 = arith.constant 0 : i32
    %c0_i32_1 = arith.constant 0 : i32
    return %c0_i32, %c0_i32_0 : i32, i32
  }
  func.func @transform_23(%arg0: i32) -> (i32, i32) {
    %c0_i32 = arith.constant 0 : i32
    %c0_i32_0 = arith.constant 0 : i32
    %c0_i32_1 = arith.constant 0 : i32
    return %c0_i32, %c0_i32_0 : i32, i32
  }
  func.func @transform_24(%arg0: i32) -> (i32, i32, i32) {
    %c0_i32 = arith.constant 0 : i32
    %c0_i32_0 = arith.constant 0 : i32
    %c0_i32_1 = arith.constant 0 : i32
    return %arg0, %c0_i32, %c0_i32_0 : i32, i32, i32
  }
}

</mosaic_0001>

<llo_original>
// kernel: bert_for_sequence_classification.1
$region0: #{bert_for_sequence_classification.1}
  #allocation0 [shape = 'u32[]', space=smem, size = 0x4, offset = 0x4, fixed_abs, tag = 'smem constant byte address 0x4 - core index']
  #allocation1 [shape = 'u32[144,128]{1,0:T(1,128)}', space=vmem, size = 0x12000, scoped, tag = 'internal scratch']
  #allocation2 [shape = 'f32[8,32]{1,0:T(8,128)}', space=vmem, size = 0x1000, scoped, tag = 'scratch operand']
  %s0 = inlined_call_operand.vmem [shape: f32[2,8,32], index: 0, kind: input, shape index: {}]
  %s1 = inlined_call_operand.vmem [shape: f32[2,1,8], index: 1, kind: input, shape index: {}]
  %s2 = inlined_call_operand.vmem [shape: f32[1,32], index: 2, kind: input, shape index: {}]
  %s3 = inlined_call_operand.vmem [shape: f32[1,32], index: 3, kind: input, shape index: {}]
  %s4 = inlined_call_operand.vmem [shape: bf16[2,32,32], index: 4, kind: input, shape index: {}]
  %s5 = inlined_call_operand.vmem [shape: f32[2,32,1], index: 5, kind: input, shape index: {}]
  %s6 = inlined_call_operand.vmem [shape: bf16[2,32,32], index: 6, kind: input, shape index: {}]
  %s7 = inlined_call_operand.vmem [shape: f32[2,32,1], index: 7, kind: input, shape index: {}]
  %s8 = inlined_call_operand.vmem [shape: bf16[2,32,32], index: 8, kind: input, shape index: {}]
  %s9 = inlined_call_operand.vmem [shape: f32[2,32,1], index: 9, kind: input, shape index: {}]
  %s10 = inlined_call_operand.vmem [shape: bf16[2,32,32], index: 10, kind: input, shape index: {}]
  %s11 = inlined_call_operand.vmem [shape: f32[2,1,32], index: 11, kind: input, shape index: {}]
  %s12 = inlined_call_operand.vmem [shape: f32[2,1,32], index: 12, kind: input, shape index: {}]
  %s13 = inlined_call_operand.vmem [shape: f32[2,1,32], index: 13, kind: input, shape index: {}]
  %s14 = inlined_call_operand.vmem [shape: bf16[2,32,64], index: 14, kind: input, shape index: {}]
  %s15 = inlined_call_operand.vmem [shape: f32[2,1,64], index: 15, kind: input, shape index: {}]
  %s16 = inlined_call_operand.vmem [shape: bf16[2,64,32], index: 16, kind: input, shape index: {}]
  %s17 = inlined_call_operand.vmem [shape: f32[2,1,32], index: 17, kind: input, shape index: {}]
  %s18 = inlined_call_operand.vmem [shape: f32[2,1,32], index: 18, kind: input, shape index: {}]
  %s19 = inlined_call_operand.vmem [shape: f32[2,1,32], index: 19, kind: input, shape index: {}]
  %s20 = inlined_call_operand.vmem [shape: bf16[32,32], index: 20, kind: input, shape index: {}]
  %s21 = inlined_call_operand.vmem [shape: f32[1,32], index: 21, kind: input, shape index: {}]
  %s22 = inlined_call_operand.vmem [shape: bf16[32,128], index: 22, kind: input, shape index: {}]
  %s23 = inlined_call_operand.vmem [shape: f32[1,128], index: 23, kind: input, shape index: {}]
  %s24 = inlined_call_operand.hbm [shape: f32[2,1,128], index: 24, kind: output, shape index: {}]
  %s25 = sld [smem:[#allocation0]]
  $region136: #{bert_for_sequence_classification.1} parent=0
    _
  %s27 = ssub.s32 1, %s25
  %s28 = scalar_select 0, %s27, %s25
  $region1: #{bert_for_sequence_classification.1} parent=0
    #allocation3 [shape = 'u8[1024]{0}', space=vmem, size = 0x400, scoped, tag = 'output window, operand 0']
    #allocation4 [shape = 's32[2]{0}', space=sflag, size = 0x8, scoped, tag = 'scoped memory for bert_for_sequence_classification.1']
    %29 = vsyncpa [#allocation4], 0
    %s30 = scalar_lea.sflag [#allocation4], 1
    %31 = vsyncpa %s30, 0
    loop: start=0, step=1, limit=4
    $region2: #{bert_for_sequence_classification.1} parent=1 // loop_pre_header
      _
    $region3: #{bert_for_sequence_classification.1} parent=1 // loop_header
      %s33 = sphi 0, %s37
      %p34 = scmp.ge.s32.totalorder %s33, 4
      %s43 = sphi 0, %s45
      %s46 = sphi 0, %s43
      %s47 = sphi 0, %s46
      %s63 = sphi 0, %s47
      %s69 = sphi 0, %s71
      %s72 = sphi 0, %s69
      %s73 = sphi 0, %s72
      %s89 = sphi 0, %s73
      %s93 = sphi 0, %s93
      %s95 = sphi 0, %s93
      %s96 = sphi 0, %s95
      %s110 = sphi 0, %s96
      %s114 = sphi 0, %s114
      %s116 = sphi 0, %s114
      %s117 = sphi 0, %s116
      %s131 = sphi 0, %s117
      %s135 = sphi 0, %s135
      %s137 = sphi 0, %s135
      %s138 = sphi 0, %s137
      %s152 = sphi 0, %s138
      %s156 = sphi 0, %s156
      %s158 = sphi 0, %s156
      %s159 = sphi 0, %s158
      %s173 = sphi 0, %s159
      %s177 = sphi 0, %s177
      %s179 = sphi 0, %s177
      %s180 = sphi 0, %s179
      %s194 = sphi 0, %s180
      %s198 = sphi 0, %s198
      %s200 = sphi 0, %s198
      %s201 = sphi 0, %s200
      %s215 = sphi 0, %s201
      %s219 = sphi 0, %s219
      %s221 = sphi 0, %s219
      %s222 = sphi 0, %s221
      %s236 = sphi 0, %s222
      %s240 = sphi 0, %s240
      %s242 = sphi 0, %s240
      %s243 = sphi 0, %s242
      %s257 = sphi 0, %s243
      %s261 = sphi 0, %s261
      %s263 = sphi 0, %s261
      %s264 = sphi 0, %s263
      %s278 = sphi 0, %s264
      %s282 = sphi 0, %s282
      %s284 = sphi 0, %s282
      %s285 = sphi 0, %s284
      %s299 = sphi 0, %s285
      %s303 = sphi 0, %s303
      %s305 = sphi 0, %s303
      %s306 = sphi 0, %s305
      %s320 = sphi 0, %s306
      %s324 = sphi 0, %s324
      %s326 = sphi 0, %s324
      %s327 = sphi 0, %s326
      %s341 = sphi 0, %s327
      %s345 = sphi 0, %s345
      %s347 = sphi 0, %s345
      %s348 = sphi 0, %s347
      %s362 = sphi 0, %s348
      %s366 = sphi 0, %s366
      %s368 = sphi 0, %s366
      %s369 = sphi 0, %s368
      %s383 = sphi 0, %s369
      %s387 = sphi 0, %s387
      %s389 = sphi 0, %s387
      %s390 = sphi 0, %s389
      %s404 = sphi 0, %s390
      %s408 = sphi 0, %s408
      %s410 = sphi 0, %s408
      %s411 = sphi 0, %s410
      %s425 = sphi 0, %s411
      %s429 = sphi 0, %s429
      %s431 = sphi 0, %s429
      %s432 = sphi 0, %s431
      %s446 = sphi 0, %s432
      %s450 = sphi 0, %s450
      %s452 = sphi 0, %s450
      %s453 = sphi 0, %s452
      %s467 = sphi 0, %s453
      %s471 = sphi 0, %s471
      %s473 = sphi 0, %s471
      %s474 = sphi 0, %s473
      %s488 = sphi 0, %s474
      %s492 = sphi 0, %s492
      %s494 = sphi 0, %s492
      %s495 = sphi 0, %s494
      %s509 = sphi 0, %s495
      %s513 = sphi 0, %s513
      %s515 = sphi 0, %s513
      %s516 = sphi 0, %s515
      %s530 = sphi 0, %s516
      %s534 = sphi 0, %s534
      %s536 = sphi 0, %s534
      %s537 = sphi 0, %s536
      %s551 = sphi 0, %s537
      %s557 = sphi 0, %s559
      %s560 = sphi 0, %s557
      %s561 = sphi 0, %s560
      %s577 = sphi 0, %s561
    $region4: #{bert_for_sequence_classification.1} parent=1 // loop_header_branch
      %36 = sbr.rel (%p34) target = $region8
    $region5: #{bert_for_sequence_classification.1} parent=1 // loop_body
      %s38 = ssub.s32 %s33, 1
      %s39 = ssub.s32 %s33, 2
      %s40 = sadd.s32 %s33, 1
      %s41 = ssub.s32 %s33, %s40
      %p42 = scmp.eq.s32.totalorder %s41, 0
      %s44 = sadd.s32 %s43, 1
      %s45 = scalar_select %p42, %s43, %s44
      %p48 = pneg %p42
      %p49 = scmp.eq.s32.totalorder %s33, 1
      %p50 = por %p48, %p49
      %p51 = scmp.ne.s32.totalorder %s43, %s46
      %p52 = scmp.eq.s32.totalorder %s33, 0
      %p53 = por %p51, %p52
      %p54 = scmp.ne.s32.totalorder %s43, %s46
      %p55 = scmp.eq.s32.totalorder %s38, 1
      %p56 = por %p54, %p55
      %p57 = scmp.ne.s32.totalorder %s46, %s47
      %p58 = scmp.eq.s32.totalorder %s38, 0
      %p59 = por %p57, %p58
      %p60 = scmp.ne.s32.totalorder %s46, %s47
      %p61 = scmp.eq.s32.totalorder %s39, 1
      %p62 = por %p60, %p61
      %p64 = scmp.ne.s32.totalorder %s47, %s63
      %p65 = scmp.eq.s32.totalorder %s39, 0
      %p66 = por %p64, %p65
      %s67 = ssub.s32 %s33, %s40
      %p68 = scmp.eq.s32.totalorder %s67, 0
      %s70 = sadd.s32 %s69, 1
      %s71 = scalar_select %p68, %s69, %s70
      %p74 = pneg %p68
      %p75 = scmp.eq.s32.totalorder %s33, 1
      %p76 = por %p74, %p75
      %p77 = scmp.ne.s32.totalorder %s69, %s72
      %p78 = scmp.eq.s32.totalorder %s33, 0
      %p79 = por %p77, %p78
      %p80 = scmp.ne.s32.totalorder %s69, %s72
      %p81 = scmp.eq.s32.totalorder %s38, 1
      %p82 = por %p80, %p81
      %p83 = scmp.ne.s32.totalorder %s72, %s73
      %p84 = scmp.eq.s32.totalorder %s38, 0
      %p85 = por %p83, %p84
      %p86 = scmp.ne.s32.totalorder %s72, %s73
      %p87 = scmp.eq.s32.totalorder %s39, 1
      %p88 = por %p86, %p87
      %p90 = scmp.ne.s32.totalorder %s73, %s89
      %p91 = scmp.eq.s32.totalorder %s39, 0
      %p92 = por %p90, %p91
      %s94 = sadd.s32 %s93, 1
      %p97 = scmp.eq.s32.totalorder %s33, 1
      %p98 = scmp.ne.s32.totalorder %s93, %s95
      %p99 = scmp.eq.s32.totalorder %s33, 0
      %p100 = por %p98, %p99
      %p101 = scmp.ne.s32.totalorder %s93, %s95
      %p102 = scmp.eq.s32.totalorder %s38, 1
      %p103 = por %p101, %p102
      %p104 = scmp.ne.s32.totalorder %s95, %s96
      %p105 = scmp.eq.s32.totalorder %s38, 0
      %p106 = por %p104, %p105
      %p107 = scmp.ne.s32.totalorder %s95, %s96
      %p108 = scmp.eq.s32.totalorder %s39, 1
      %p109 = por %p107, %p108
      %p111 = scmp.ne.s32.totalorder %s96, %s110
      %p112 = scmp.eq.s32.totalorder %s39, 0
      %p113 = por %p111, %p112
      %s115 = sadd.s32 %s114, 1
      %p118 = scmp.eq.s32.totalorder %s33, 1
      %p119 = scmp.ne.s32.totalorder %s114, %s116
      %p120 = scmp.eq.s32.totalorder %s33, 0
      %p121 = por %p119, %p120
      %p122 = scmp.ne.s32.totalorder %s114, %s116
      %p123 = scmp.eq.s32.totalorder %s38, 1
      %p124 = por %p122, %p123
      %p125 = scmp.ne.s32.totalorder %s116, %s117
      %p126 = scmp.eq.s32.totalorder %s38, 0
      %p127 = por %p125, %p126
      %p128 = scmp.ne.s32.totalorder %s116, %s117
      %p129 = scmp.eq.s32.totalorder %s39, 1
      %p130 = por %p128, %p129
      %p132 = scmp.ne.s32.totalorder %s117, %s131
      %p133 = scmp.eq.s32.totalorder %s39, 0
      %p134 = por %p132, %p133
      %s136 = sadd.s32 %s135, 1
      %p139 = scmp.eq.s32.totalorder %s33, 1
      %p140 = scmp.ne.s32.totalorder %s135, %s137
      %p141 = scmp.eq.s32.totalorder %s33, 0
      %p142 = por %p140, %p141
      %p143 = scmp.ne.s32.totalorder %s135, %s137
      %p144 = scmp.eq.s32.totalorder %s38, 1
      %p145 = por %p143, %p144
      %p146 = scmp.ne.s32.totalorder %s137, %s138
      %p147 = scmp.eq.s32.totalorder %s38, 0
      %p148 = por %p146, %p147
      %p149 = scmp.ne.s32.totalorder %s137, %s138
      %p150 = scmp.eq.s32.totalorder %s39, 1
      %p151 = por %p149, %p150
      %p153 = scmp.ne.s32.totalorder %s138, %s152
      %p154 = scmp.eq.s32.totalorder %s39, 0
      %p155 = por %p153, %p154
      %s157 = sadd.s32 %s156, 1
      %p160 = scmp.eq.s32.totalorder %s33, 1
      %p161 = scmp.ne.s32.totalorder %s156, %s158
      %p162 = scmp.eq.s32.totalorder %s33, 0
      %p163 = por %p161, %p162
      %p164 = scmp.ne.s32.totalorder %s156, %s158
      %p165 = scmp.eq.s32.totalorder %s38, 1
      %p166 = por %p164, %p165
      %p167 = scmp.ne.s32.totalorder %s158, %s159
      %p168 = scmp.eq.s32.totalorder %s38, 0
      %p169 = por %p167, %p168
      %p170 = scmp.ne.s32.totalorder %s158, %s159
      %p171 = scmp.eq.s32.totalorder %s39, 1
      %p172 = por %p170, %p171
      %p174 = scmp.ne.s32.totalorder %s159, %s173
      %p175 = scmp.eq.s32.totalorder %s39, 0
      %p176 = por %p174, %p175
      %s178 = sadd.s32 %s177, 1
      %p181 = scmp.eq.s32.totalorder %s33, 1
      %p182 = scmp.ne.s32.totalorder %s177, %s179
      %p183 = scmp.eq.s32.totalorder %s33, 0
      %p184 = por %p182, %p183
      %p185 = scmp.ne.s32.totalorder %s177, %s179
      %p186 = scmp.eq.s32.totalorder %s38, 1
      %p187 = por %p185, %p186
      %p188 = scmp.ne.s32.totalorder %s179, %s180
      %p189 = scmp.eq.s32.totalorder %s38, 0
      %p190 = por %p188, %p189
      %p191 = scmp.ne.s32.totalorder %s179, %s180
      %p192 = scmp.eq.s32.totalorder %s39, 1
      %p193 = por %p191, %p192
      %p195 = scmp.ne.s32.totalorder %s180, %s194
      %p196 = scmp.eq.s32.totalorder %s39, 0
      %p197 = por %p195, %p196
      %s199 = sadd.s32 %s198, 1
      %p202 = scmp.eq.s32.totalorder %s33, 1
      %p203 = scmp.ne.s32.totalorder %s198, %s200
      %p204 = scmp.eq.s32.totalorder %s33, 0
      %p205 = por %p203, %p204
      %p206 = scmp.ne.s32.totalorder %s198, %s200
      %p207 = scmp.eq.s32.totalorder %s38, 1
      %p208 = por %p206, %p207
      %p209 = scmp.ne.s32.totalorder %s200, %s201
      %p210 = scmp.eq.s32.totalorder %s38, 0
      %p211 = por %p209, %p210
      %p212 = scmp.ne.s32.totalorder %s200, %s201
      %p213 = scmp.eq.s32.totalorder %s39, 1
      %p214 = por %p212, %p213
      %p216 = scmp.ne.s32.totalorder %s201, %s215
      %p217 = scmp.eq.s32.totalorder %s39, 0
      %p218 = por %p216, %p217
      %s220 = sadd.s32 %s219, 1
      %p223 = scmp.eq.s32.totalorder %s33, 1
      %p224 = scmp.ne.s32.totalorder %s219, %s221
      %p225 = scmp.eq.s32.totalorder %s33, 0
      %p226 = por %p224, %p225
      %p227 = scmp.ne.s32.totalorder %s219, %s221
      %p228 = scmp.eq.s32.totalorder %s38, 1
      %p229 = por %p227, %p228
      %p230 = scmp.ne.s32.totalorder %s221, %s222
      %p231 = scmp.eq.s32.totalorder %s38, 0
      %p232 = por %p230, %p231
      %p233 = scmp.ne.s32.totalorder %s221, %s222
      %p234 = scmp.eq.s32.totalorder %s39, 1
      %p235 = por %p233, %p234
      %p237 = scmp.ne.s32.totalorder %s222, %s236
      %p238 = scmp.eq.s32.totalorder %s39, 0
      %p239 = por %p237, %p238
      %s241 = sadd.s32 %s240, 1
      %p244 = scmp.eq.s32.totalorder %s33, 1
      %p245 = scmp.ne.s32.totalorder %s240, %s242
      %p246 = scmp.eq.s32.totalorder %s33, 0
      %p247 = por %p245, %p246
      %p248 = scmp.ne.s32.totalorder %s240, %s242
      %p249 = scmp.eq.s32.totalorder %s38, 1
      %p250 = por %p248, %p249
      %p251 = scmp.ne.s32.totalorder %s242, %s243
      %p252 = scmp.eq.s32.totalorder %s38, 0
      %p253 = por %p251, %p252
      %p254 = scmp.ne.s32.totalorder %s242, %s243
      %p255 = scmp.eq.s32.totalorder %s39, 1
      %p256 = por %p254, %p255
      %p258 = scmp.ne.s32.totalorder %s243, %s257
      %p259 = scmp.eq.s32.totalorder %s39, 0
      %p260 = por %p258, %p259
      %s262 = sadd.s32 %s261, 1
      %p265 = scmp.eq.s32.totalorder %s33, 1
      %p266 = scmp.ne.s32.totalorder %s261, %s263
      %p267 = scmp.eq.s32.totalorder %s33, 0
      %p268 = por %p266, %p267
      %p269 = scmp.ne.s32.totalorder %s261, %s263
      %p270 = scmp.eq.s32.totalorder %s38, 1
      %p271 = por %p269, %p270
      %p272 = scmp.ne.s32.totalorder %s263, %s264
      %p273 = scmp.eq.s32.totalorder %s38, 0
      %p274 = por %p272, %p273
      %p275 = scmp.ne.s32.totalorder %s263, %s264
      %p276 = scmp.eq.s32.totalorder %s39, 1
      %p277 = por %p275, %p276
      %p279 = scmp.ne.s32.totalorder %s264, %s278
      %p280 = scmp.eq.s32.totalorder %s39, 0
      %p281 = por %p279, %p280
      %s283 = sadd.s32 %s282, 1
      %p286 = scmp.eq.s32.totalorder %s33, 1
      %p287 = scmp.ne.s32.totalorder %s282, %s284
      %p288 = scmp.eq.s32.totalorder %s33, 0
      %p289 = por %p287, %p288
      %p290 = scmp.ne.s32.totalorder %s282, %s284
      %p291 = scmp.eq.s32.totalorder %s38, 1
      %p292 = por %p290, %p291
      %p293 = scmp.ne.s32.totalorder %s284, %s285
      %p294 = scmp.eq.s32.totalorder %s38, 0
      %p295 = por %p293, %p294
      %p296 = scmp.ne.s32.totalorder %s284, %s285
      %p297 = scmp.eq.s32.totalorder %s39, 1
      %p298 = por %p296, %p297
      %p300 = scmp.ne.s32.totalorder %s285, %s299
      %p301 = scmp.eq.s32.totalorder %s39, 0
      %p302 = por %p300, %p301
      %s304 = sadd.s32 %s303, 1
      %p307 = scmp.eq.s32.totalorder %s33, 1
      %p308 = scmp.ne.s32.totalorder %s303, %s305
      %p309 = scmp.eq.s32.totalorder %s33, 0
      %p310 = por %p308, %p309
      %p311 = scmp.ne.s32.totalorder %s303, %s305
      %p312 = scmp.eq.s32.totalorder %s38, 1
      %p313 = por %p311, %p312
      %p314 = scmp.ne.s32.totalorder %s305, %s306
      %p315 = scmp.eq.s32.totalorder %s38, 0
      %p316 = por %p314, %p315
      %p317 = scmp.ne.s32.totalorder %s305, %s306
      %p318 = scmp.eq.s32.totalorder %s39, 1
      %p319 = por %p317, %p318
      %p321 = scmp.ne.s32.totalorder %s306, %s320
      %p322 = scmp.eq.s32.totalorder %s39, 0
      %p323 = por %p321, %p322
      %s325 = sadd.s32 %s324, 1
      %p328 = scmp.eq.s32.totalorder %s33, 1
      %p329 = scmp.ne.s32.totalorder %s324, %s326
      %p330 = scmp.eq.s32.totalorder %s33, 0
      %p331 = por %p329, %p330
      %p332 = scmp.ne.s32.totalorder %s324, %s326
      %p333 = scmp.eq.s32.totalorder %s38, 1
      %p334 = por %p332, %p333
      %p335 = scmp.ne.s32.totalorder %s326, %s327
      %p336 = scmp.eq.s32.totalorder %s38, 0
      %p337 = por %p335, %p336
      %p338 = scmp.ne.s32.totalorder %s326, %s327
      %p339 = scmp.eq.s32.totalorder %s39, 1
      %p340 = por %p338, %p339
      %p342 = scmp.ne.s32.totalorder %s327, %s341
      %p343 = scmp.eq.s32.totalorder %s39, 0
      %p344 = por %p342, %p343
      %s346 = sadd.s32 %s345, 1
      %p349 = scmp.eq.s32.totalorder %s33, 1
      %p350 = scmp.ne.s32.totalorder %s345, %s347
      %p351 = scmp.eq.s32.totalorder %s33, 0
      %p352 = por %p350, %p351
      %p353 = scmp.ne.s32.totalorder %s345, %s347
      %p354 = scmp.eq.s32.totalorder %s38, 1
      %p355 = por %p353, %p354
      %p356 = scmp.ne.s32.totalorder %s347, %s348
      %p357 = scmp.eq.s32.totalorder %s38, 0
      %p358 = por %p356, %p357
      %p359 = scmp.ne.s32.totalorder %s347, %s348
      %p360 = scmp.eq.s32.totalorder %s39, 1
      %p361 = por %p359, %p360
      %p363 = scmp.ne.s32.totalorder %s348, %s362
      %p364 = scmp.eq.s32.totalorder %s39, 0
      %p365 = por %p363, %p364
      %s367 = sadd.s32 %s366, 1
      %p370 = scmp.eq.s32.totalorder %s33, 1
      %p371 = scmp.ne.s32.totalorder %s366, %s368
      %p372 = scmp.eq.s32.totalorder %s33, 0
      %p373 = por %p371, %p372
      %p374 = scmp.ne.s32.totalorder %s366, %s368
      %p375 = scmp.eq.s32.totalorder %s38, 1
      %p376 = por %p374, %p375
      %p377 = scmp.ne.s32.totalorder %s368, %s369
      %p378 = scmp.eq.s32.totalorder %s38, 0
      %p379 = por %p377, %p378
      %p380 = scmp.ne.s32.totalorder %s368, %s369
      %p381 = scmp.eq.s32.totalorder %s39, 1
      %p382 = por %p380, %p381
      %p384 = scmp.ne.s32.totalorder %s369, %s383
      %p385 = scmp.eq.s32.totalorder %s39, 0
      %p386 = por %p384, %p385
      %s388 = sadd.s32 %s387, 1
      %p391 = scmp.eq.s32.totalorder %s33, 1
      %p392 = scmp.ne.s32.totalorder %s387, %s389
      %p393 = scmp.eq.s32.totalorder %s33, 0
      %p394 = por %p392, %p393
      %p395 = scmp.ne.s32.totalorder %s387, %s389
      %p396 = scmp.eq.s32.totalorder %s38, 1
      %p397 = por %p395, %p396
      %p398 = scmp.ne.s32.totalorder %s389, %s390
      %p399 = scmp.eq.s32.totalorder %s38, 0
      %p400 = por %p398, %p399
      %p401 = scmp.ne.s32.totalorder %s389, %s390
      %p402 = scmp.eq.s32.totalorder %s39, 1
      %p403 = por %p401, %p402
      %p405 = scmp.ne.s32.totalorder %s390, %s404
      %p406 = scmp.eq.s32.totalorder %s39, 0
      %p407 = por %p405, %p406
      %s409 = sadd.s32 %s408, 1
      %p412 = scmp.eq.s32.totalorder %s33, 1
      %p413 = scmp.ne.s32.totalorder %s408, %s410
      %p414 = scmp.eq.s32.totalorder %s33, 0
      %p415 = por %p413, %p414
      %p416 = scmp.ne.s32.totalorder %s408, %s410
      %p417 = scmp.eq.s32.totalorder %s38, 1
      %p418 = por %p416, %p417
      %p419 = scmp.ne.s32.totalorder %s410, %s411
      %p420 = scmp.eq.s32.totalorder %s38, 0
      %p421 = por %p419, %p420
      %p422 = scmp.ne.s32.totalorder %s410, %s411
      %p423 = scmp.eq.s32.totalorder %s39, 1
      %p424 = por %p422, %p423
      %p426 = scmp.ne.s32.totalorder %s411, %s425
      %p427 = scmp.eq.s32.totalorder %s39, 0
      %p428 = por %p426, %p427
      %s430 = sadd.s32 %s429, 1
      %p433 = scmp.eq.s32.totalorder %s33, 1
      %p434 = scmp.ne.s32.totalorder %s429, %s431
      %p435 = scmp.eq.s32.totalorder %s33, 0
      %p436 = por %p434, %p435
      %p437 = scmp.ne.s32.totalorder %s429, %s431
      %p438 = scmp.eq.s32.totalorder %s38, 1
      %p439 = por %p437, %p438
      %p440 = scmp.ne.s32.totalorder %s431, %s432
      %p441 = scmp.eq.s32.totalorder %s38, 0
      %p442 = por %p440, %p441
      %p443 = scmp.ne.s32.totalorder %s431, %s432
      %p444 = scmp.eq.s32.totalorder %s39, 1
      %p445 = por %p443, %p444
      %p447 = scmp.ne.s32.totalorder %s432, %s446
      %p448 = scmp.eq.s32.totalorder %s39, 0
      %p449 = por %p447, %p448
      %s451 = sadd.s32 %s450, 1
      %p454 = scmp.eq.s32.totalorder %s33, 1
      %p455 = scmp.ne.s32.totalorder %s450, %s452
      %p456 = scmp.eq.s32.totalorder %s33, 0
      %p457 = por %p455, %p456
      %p458 = scmp.ne.s32.totalorder %s450, %s452
      %p459 = scmp.eq.s32.totalorder %s38, 1
      %p460 = por %p458, %p459
      %p461 = scmp.ne.s32.totalorder %s452, %s453
      %p462 = scmp.eq.s32.totalorder %s38, 0
      %p463 = por %p461, %p462
      %p464 = scmp.ne.s32.totalorder %s452, %s453
      %p465 = scmp.eq.s32.totalorder %s39, 1
      %p466 = por %p464, %p465
      %p468 = scmp.ne.s32.totalorder %s453, %s467
      %p469 = scmp.eq.s32.totalorder %s39, 0
      %p470 = por %p468, %p469
      %s472 = sadd.s32 %s471, 1
      %p475 = scmp.eq.s32.totalorder %s33, 1
      %p476 = scmp.ne.s32.totalorder %s471, %s473
      %p477 = scmp.eq.s32.totalorder %s33, 0
      %p478 = por %p476, %p477
      %p479 = scmp.ne.s32.totalorder %s471, %s473
      %p480 = scmp.eq.s32.totalorder %s38, 1
      %p481 = por %p479, %p480
      %p482 = scmp.ne.s32.totalorder %s473, %s474
      %p483 = scmp.eq.s32.totalorder %s38, 0
      %p484 = por %p482, %p483
      %p485 = scmp.ne.s32.totalorder %s473, %s474
      %p486 = scmp.eq.s32.totalorder %s39, 1
      %p487 = por %p485, %p486
      %p489 = scmp.ne.s32.totalorder %s474, %s488
      %p490 = scmp.eq.s32.totalorder %s39, 0
      %p491 = por %p489, %p490
      %s493 = sadd.s32 %s492, 1
      %p496 = scmp.eq.s32.totalorder %s33, 1
      %p497 = scmp.ne.s32.totalorder %s492, %s494
      %p498 = scmp.eq.s32.totalorder %s33, 0
      %p499 = por %p497, %p498
      %p500 = scmp.ne.s32.totalorder %s492, %s494
      %p501 = scmp.eq.s32.totalorder %s38, 1
      %p502 = por %p500, %p501
      %p503 = scmp.ne.s32.totalorder %s494, %s495
      %p504 = scmp.eq.s32.totalorder %s38, 0
      %p505 = por %p503, %p504
      %p506 = scmp.ne.s32.totalorder %s494, %s495
      %p507 = scmp.eq.s32.totalorder %s39, 1
      %p508 = por %p506, %p507
      %p510 = scmp.ne.s32.totalorder %s495, %s509
      %p511 = scmp.eq.s32.totalorder %s39, 0
      %p512 = por %p510, %p511
      %s514 = sadd.s32 %s513, 1
      %p517 = scmp.eq.s32.totalorder %s33, 1
      %p518 = scmp.ne.s32.totalorder %s513, %s515
      %p519 = scmp.eq.s32.totalorder %s33, 0
      %p520 = por %p518, %p519
      %p521 = scmp.ne.s32.totalorder %s513, %s515
      %p522 = scmp.eq.s32.totalorder %s38, 1
      %p523 = por %p521, %p522
      %p524 = scmp.ne.s32.totalorder %s515, %s516
      %p525 = scmp.eq.s32.totalorder %s38, 0
      %p526 = por %p524, %p525
      %p527 = scmp.ne.s32.totalorder %s515, %s516
      %p528 = scmp.eq.s32.totalorder %s39, 1
      %p529 = por %p527, %p528
      %p531 = scmp.ne.s32.totalorder %s516, %s530
      %p532 = scmp.eq.s32.totalorder %s39, 0
      %p533 = por %p531, %p532
      %s535 = sadd.s32 %s534, 1
      %p538 = scmp.eq.s32.totalorder %s33, 1
      %p539 = scmp.ne.s32.totalorder %s534, %s536
      %p540 = scmp.eq.s32.totalorder %s33, 0
      %p541 = por %p539, %p540
      %p542 = scmp.ne.s32.totalorder %s534, %s536
      %p543 = scmp.eq.s32.totalorder %s38, 1
      %p544 = por %p542, %p543
      %p545 = scmp.ne.s32.totalorder %s536, %s537
      %p546 = scmp.eq.s32.totalorder %s38, 0
      %p547 = por %p545, %p546
      %p548 = scmp.ne.s32.totalorder %s536, %s537
      %p549 = scmp.eq.s32.totalorder %s39, 1
      %p550 = por %p548, %p549
      %p552 = scmp.ne.s32.totalorder %s537, %s551
      %p553 = scmp.eq.s32.totalorder %s39, 0
      %p554 = por %p552, %p553
      %s555 = ssub.s32 %s33, %s40
      %p556 = scmp.eq.s32.totalorder %s555, 0
      %s558 = sadd.s32 %s557, 1
      %s559 = scalar_select %p556, %s557, %s558
      %p562 = pneg %p556
      %p563 = scmp.eq.s32.totalorder %s33, 1
      %p564 = por %p562, %p563
      %p565 = scmp.ne.s32.totalorder %s557, %s560
      %p566 = scmp.eq.s32.totalorder %s33, 0
      %p567 = por %p565, %p566
      %p568 = scmp.ne.s32.totalorder %s557, %s560
      %p569 = scmp.eq.s32.totalorder %s38, 1
      %p570 = por %p568, %p569
      %p571 = scmp.ne.s32.totalorder %s560, %s561
      %p572 = scmp.eq.s32.totalorder %s38, 0
      %p573 = por %p571, %p572
      %p574 = scmp.ne.s32.totalorder %s560, %s561
      %p575 = scmp.eq.s32.totalorder %s39, 1
      %p576 = por %p574, %p575
      %p578 = scmp.ne.s32.totalorder %s561, %s577
      %p579 = scmp.eq.s32.totalorder %s39, 0
      %p580 = por %p578, %p579
      %p581 = scmp.le.s32.totalorder 1, %s33
      %p582 = scmp.lt.s32.totalorder %s33, 3
      %p583 = pnand %p581, %p582
      %p584 = pneg %p583
      // Predicated region
      $region9: #{bert_for_sequence_classification.1} parent=5 // pred_check
        _
      $region10: #{bert_for_sequence_classification.1} parent=5 // pred_check_branch
        %586 = sbr.rel (%p583) target = $region12
      $region11: #{bert_for_sequence_classification.1} parent=5 // pred_region
        %s587 = ssub.s32 %s33, 1
        // Predicated region
        $region13: #{bert_for_sequence_classification.1} parent=11 // pred_check
          %p588 = pneg %p106
        $region14: #{bert_for_sequence_classification.1} parent=11 // pred_check_branch
          %590 = sbr.rel (%p588) target = $region16
        $region15: #{bert_for_sequence_classification.1} parent=11 // pred_region
          _
        $region16: #{bert_for_sequence_classification.1} parent=11 // pred_fallthru
          _
        // Predicated region
        $region17: #{bert_for_sequence_classification.1} parent=11 // pred_check
          %p591 = pneg %p127
        $region18: #{bert_for_sequence_classification.1} parent=11 // pred_check_branch
          %593 = sbr.rel (%p591) target = $region20
        $region19: #{bert_for_sequence_classification.1} parent=11 // pred_region
          _
        $region20: #{bert_for_sequence_classification.1} parent=11 // pred_fallthru
          _
        // Predicated region
        $region21: #{bert_for_sequence_classification.1} parent=11 // pred_check
          %p594 = pneg %p148
        $region22: #{bert_for_sequence_classification.1} parent=11 // pred_check_branch
          %596 = sbr.rel (%p594) target = $region24
        $region23: #{bert_for_sequence_classification.1} parent=11 // pred_region
          _
        $region24: #{bert_for_sequence_classification.1} parent=11 // pred_fallthru
          _
        // Predicated region
        $region25: #{bert_for_sequence_classification.1} parent=11 // pred_check
          %p597 = pneg %p169
        $region26: #{bert_for_sequence_classification.1} parent=11 // pred_check_branch
          %599 = sbr.rel (%p597) target = $region28
        $region27: #{bert_for_sequence_classification.1} parent=11 // pred_region
          _
        $region28: #{bert_for_sequence_classification.1} parent=11 // pred_fallthru
          _
        // Predicated region
        $region29: #{bert_for_sequence_classification.1} parent=11 // pred_check
          %p600 = pneg %p190
        $region30: #{bert_for_sequence_classification.1} parent=11 // pred_check_branch
          %602 = sbr.rel (%p600) target = $region32
        $region31: #{bert_for_sequence_classification.1} parent=11 // pred_region
          _
        $region32: #{bert_for_sequence_classification.1} parent=11 // pred_fallthru
          _
        // Predicated region
        $region33: #{bert_for_sequence_classification.1} parent=11 // pred_check
          %p603 = pneg %p211
        $region34: #{bert_for_sequence_classification.1} parent=11 // pred_check_branch
          %605 = sbr.rel (%p603) target = $region36
        $region35: #{bert_for_sequence_classification.1} parent=11 // pred_region
          _
        $region36: #{bert_for_sequence_classification.1} parent=11 // pred_fallthru
          _
        // Predicated region
        $region37: #{bert_for_sequence_classification.1} parent=11 // pred_check
          %p606 = pneg %p232
        $region38: #{bert_for_sequence_classification.1} parent=11 // pred_check_branch
          %608 = sbr.rel (%p606) target = $region40
        $region39: #{bert_for_sequence_classification.1} parent=11 // pred_region
          _
        $region40: #{bert_for_sequence_classification.1} parent=11 // pred_fallthru
          _
        // Predicated region
        $region41: #{bert_for_sequence_classification.1} parent=11 // pred_check
          %p609 = pneg %p253
        $region42: #{bert_for_sequence_classification.1} parent=11 // pred_check_branch
          %611 = sbr.rel (%p609) target = $region44
        $region43: #{bert_for_sequence_classification.1} parent=11 // pred_region
          _
        $region44: #{bert_for_sequence_classification.1} parent=11 // pred_fallthru
          _
        // Predicated region
        $region45: #{bert_for_sequence_classification.1} parent=11 // pred_check
          %p612 = pneg %p274
        $region46: #{bert_for_sequence_classification.1} parent=11 // pred_check_branch
          %614 = sbr.rel (%p612) target = $region48
        $region47: #{bert_for_sequence_classification.1} parent=11 // pred_region
          _
        $region48: #{bert_for_sequence_classification.1} parent=11 // pred_fallthru
          _
        // Predicated region
        $region49: #{bert_for_sequence_classification.1} parent=11 // pred_check
          %p615 = pneg %p295
        $region50: #{bert_for_sequence_classification.1} parent=11 // pred_check_branch
          %617 = sbr.rel (%p615) target = $region52
        $region51: #{bert_for_sequence_classification.1} parent=11 // pred_region
          _
        $region52: #{bert_for_sequence_classification.1} parent=11 // pred_fallthru
          _
        // Predicated region
        $region53: #{bert_for_sequence_classification.1} parent=11 // pred_check
          %p618 = pneg %p316
        $region54: #{bert_for_sequence_classification.1} parent=11 // pred_check_branch
          %620 = sbr.rel (%p618) target = $region56
        $region55: #{bert_for_sequence_classification.1} parent=11 // pred_region
          _
        $region56: #{bert_for_sequence_classification.1} parent=11 // pred_fallthru
          _
        // Predicated region
        $region57: #{bert_for_sequence_classification.1} parent=11 // pred_check
          %p621 = pneg %p337
        $region58: #{bert_for_sequence_classification.1} parent=11 // pred_check_branch
          %623 = sbr.rel (%p621) target = $region60
        $region59: #{bert_for_sequence_classification.1} parent=11 // pred_region
          _
        $region60: #{bert_for_sequence_classification.1} parent=11 // pred_fallthru
          _
        // Predicated region
        $region61: #{bert_for_sequence_classification.1} parent=11 // pred_check
          %p624 = pneg %p358
        $region62: #{bert_for_sequence_classification.1} parent=11 // pred_check_branch
          %626 = sbr.rel (%p624) target = $region64
        $region63: #{bert_for_sequence_classification.1} parent=11 // pred_region
          _
        $region64: #{bert_for_sequence_classification.1} parent=11 // pred_fallthru
          _
        // Predicated region
        $region65: #{bert_for_sequence_classification.1} parent=11 // pred_check
          %p627 = pneg %p379
        $region66: #{bert_for_sequence_classification.1} parent=11 // pred_check_branch
          %629 = sbr.rel (%p627) target = $region68
        $region67: #{bert_for_sequence_classification.1} parent=11 // pred_region
          _
        $region68: #{bert_for_sequence_classification.1} parent=11 // pred_fallthru
          _
        // Predicated region
        $region69: #{bert_for_sequence_classification.1} parent=11 // pred_check
          %p630 = pneg %p400
        $region70: #{bert_for_sequence_classification.1} parent=11 // pred_check_branch
          %632 = sbr.rel (%p630) target = $region72
        $region71: #{bert_for_sequence_classification.1} parent=11 // pred_region
          _
        $region72: #{bert_for_sequence_classification.1} parent=11 // pred_fallthru
          _
        // Predicated region
        $region73: #{bert_for_sequence_classification.1} parent=11 // pred_check
          %p633 = pneg %p421
        $region74: #{bert_for_sequence_classification.1} parent=11 // pred_check_branch
          %635 = sbr.rel (%p633) target = $region76
        $region75: #{bert_for_sequence_classification.1} parent=11 // pred_region
          _
        $region76: #{bert_for_sequence_classification.1} parent=11 // pred_fallthru
          _
        // Predicated region
        $region77: #{bert_for_sequence_classification.1} parent=11 // pred_check
          %p636 = pneg %p442
        $region78: #{bert_for_sequence_classification.1} parent=11 // pred_check_branch
          %638 = sbr.rel (%p636) target = $region80
        $region79: #{bert_for_sequence_classification.1} parent=11 // pred_region
          _
        $region80: #{bert_for_sequence_classification.1} parent=11 // pred_fallthru
          _
        // Predicated region
        $region81: #{bert_for_sequence_classification.1} parent=11 // pred_check
          %p639 = pneg %p463
        $region82: #{bert_for_sequence_classification.1} parent=11 // pred_check_branch
          %641 = sbr.rel (%p639) target = $region84
        $region83: #{bert_for_sequence_classification.1} parent=11 // pred_region
          _
        $region84: #{bert_for_sequence_classification.1} parent=11 // pred_fallthru
          _
        // Predicated region
        $region85: #{bert_for_sequence_classification.1} parent=11 // pred_check
          %p642 = pneg %p484
        $region86: #{bert_for_sequence_classification.1} parent=11 // pred_check_branch
          %644 = sbr.rel (%p642) target = $region88
        $region87: #{bert_for_sequence_classification.1} parent=11 // pred_region
          _
        $region88: #{bert_for_sequence_classification.1} parent=11 // pred_fallthru
          _
        // Predicated region
        $region89: #{bert_for_sequence_classification.1} parent=11 // pred_check
          %p645 = pneg %p505
        $region90: #{bert_for_sequence_classification.1} parent=11 // pred_check_branch
          %647 = sbr.rel (%p645) target = $region92
        $region91: #{bert_for_sequence_classification.1} parent=11 // pred_region
          _
        $region92: #{bert_for_sequence_classification.1} parent=11 // pred_fallthru
          _
        // Predicated region
        $region93: #{bert_for_sequence_classification.1} parent=11 // pred_check
          %p648 = pneg %p526
        $region94: #{bert_for_sequence_classification.1} parent=11 // pred_check_branch
          %650 = sbr.rel (%p648) target = $region96
        $region95: #{bert_for_sequence_classification.1} parent=11 // pred_region
          _
        $region96: #{bert_for_sequence_classification.1} parent=11 // pred_fallthru
          _
        // Predicated region
        $region97: #{bert_for_sequence_classification.1} parent=11 // pred_check
          %p651 = pneg %p547
        $region98: #{bert_for_sequence_classification.1} parent=11 // pred_check_branch
          %653 = sbr.rel (%p651) target = $region100
        $region99: #{bert_for_sequence_classification.1} parent=11 // pred_region
          _
        $region100: #{bert_for_sequence_classification.1} parent=11 // pred_fallthru
          _
      $region12: #{bert_for_sequence_classification.1} parent=5 // pred_fallthru
        _
      %p654 = scmp.lt.s32.totalorder %s33, 2
      // Predicated region
      $region101: #{bert_for_sequence_classification.1} parent=5 // pred_check
        %p655 = pneg %p654
      $region102: #{bert_for_sequence_classification.1} parent=5 // pred_check_branch
        %657 = sbr.rel (%p655) target = $region104
      $region103: #{bert_for_sequence_classification.1} parent=5 // pred_region
        // Predicated region
        $region105: #{bert_for_sequence_classification.1} parent=103 // pred_check
          %p658 = pneg %p53
        $region106: #{bert_for_sequence_classification.1} parent=103 // pred_check_branch
          %660 = sbr.rel (%p658) target = $region108
        $region107: #{bert_for_sequence_classification.1} parent=103 // pred_region
          %p661 = scmp.lt.s32.totalorder %s33, 1
          %s662 = scalar_select %p661, %s33, 1
          %s663 = smul.addr %s662, 8
          %s664 = scalar_lea.vmem %s0, %s663
        $region108: #{bert_for_sequence_classification.1} parent=103 // pred_fallthru
          _
        // Predicated region
        $region109: #{bert_for_sequence_classification.1} parent=103 // pred_check
          %p665 = pneg %p79
        $region110: #{bert_for_sequence_classification.1} parent=103 // pred_check_branch
          %667 = sbr.rel (%p665) target = $region112
        $region111: #{bert_for_sequence_classification.1} parent=103 // pred_region
          %p668 = scmp.lt.s32.totalorder %s33, 1
          %s669 = scalar_select %p668, %s33, 1
          %s670 = scalar_lea.vmem %s1, %s669
        $region112: #{bert_for_sequence_classification.1} parent=103 // pred_fallthru
          _
      $region104: #{bert_for_sequence_classification.1} parent=5 // pred_fallthru
        _
      %p671 = scmp.le.s32.totalorder 1, %s33
      %p672 = scmp.lt.s32.totalorder %s33, 3
      %p673 = pnand %p671, %p672
      %p674 = pneg %p673
      // Predicated region
      $region113: #{bert_for_sequence_classification.1} parent=5 // pred_check
        _
      $region114: #{bert_for_sequence_classification.1} parent=5 // pred_check_branch
        %676 = sbr.rel (%p673) target = $region116
      $region115: #{bert_for_sequence_classification.1} parent=5 // pred_region
        %s677 = ssub.s32 %s33, 1
        %p678 = scmp.lt.s32.totalorder %s38, 1
        %s679 = scalar_select %p678, %s38, 1
        %s680 = smul.addr %s679, 8
        %s681 = scalar_lea.vmem %s0, %s680
        %p682 = pneg %p59
        %p683 = pneg %p56
        %p684 = scmp.lt.s32.totalorder %s38, 1
        %s685 = scalar_select %p684, %s38, 1
        %s686 = scalar_lea.vmem %s1, %s685
        %p687 = pneg %p85
        %p688 = pneg %p82
        %p689 = pneg %p106
        %p690 = pneg %p103
        %p691 = pneg %p127
        %p692 = pneg %p124
        %p693 = pneg %p148
        %p694 = pneg %p145
        %p695 = pneg %p169
        %p696 = pneg %p166
        %p697 = pneg %p190
        %p698 = pneg %p187
        %p699 = pneg %p211
        %p700 = pneg %p208
        %p701 = pneg %p232
        %p702 = pneg %p229
        %p703 = pneg %p253
        %p704 = pneg %p250
        %p705 = pneg %p274
        %p706 = pneg %p271
        %p707 = pneg %p295
        %p708 = pneg %p292
        %p709 = pneg %p316
        %p710 = pneg %p313
        %p711 = pneg %p337
        %p712 = pneg %p334
        %p713 = pneg %p358
        %p714 = pneg %p355
        %p715 = pneg %p379
        %p716 = pneg %p376
        %p717 = pneg %p400
        %p718 = pneg %p397
        %p719 = pneg %p421
        %p720 = pneg %p418
        %p721 = pneg %p442
        %p722 = pneg %p439
        %p723 = pneg %p463
        %p724 = pneg %p460
        %p725 = pneg %p484
        %p726 = pneg %p481
        %p727 = pneg %p505
        %p728 = pneg %p502
        %p729 = pneg %p526
        %p730 = pneg %p523
        %p731 = pneg %p547
        %p732 = pneg %p544
        %p733 = pneg %p573
        %p734 = pneg %p570
        %s735 = sand.u32 %s560, 1
        %s736 = scalar_lea.sflag [#allocation4], %s735
        %s737 = sand.u32 %s560, 1
        %s738 = scalar_lea.vmem [#allocation3], %s737
        %p739 = scmp.lt.s32.totalorder %s38, 1
        %s740 = scalar_select %p739, %s38, 1
        %s741 = smul.addr %s740, 8
        %s742 = scalar_lea.vmem %s0, %s741
        %p743 = scmp.lt.s32.totalorder %s38, 1
        %s744 = scalar_select %p743, %s38, 1
        %s745 = scalar_lea.vmem %s1, %s744
        %v747 = vld [vmem:[%s745] sm:$0x1]
        %v748 = vld [vmem:[%s742] sm:$0xff]
        %v749 = vld [vmem:[%s2] sm:$0x1]
        %v750 = vld [vmem:[%s3] sm:$0x1]
        %vm751 = vcmask 261120
        %v752 = vsel %vm751, %v748, 0.0
        %753 = vadd.xlane.f32.xlu0 %v752
        %v754 = vpop.xlane.xlu0 %753
        %v755 = vrcp.pop 32.0
        %v756 = vmul.f32 %v754, %v755
        %v757 = vsub.f32 %v748, %v756
        %v758 = vmul.f32 %v757, %v757
        %v759 = vsel %vm751, %v758, 0.0
        %760 = vadd.xlane.f32.xlu0 %v759
        %v761 = vpop.xlane.xlu0 %760
        %v762 = vmul.f32 %v761, %v755
        %v763 = vadd.f32 %v762, 1e-12
        %v764 = vrsqrt.pop %v763
        %v765 = vmul.f32 %v757, %v764
        %v767 = vlaneseq
        %v768 = vshrl.u32 %v767, 7
        %v769 = vsub.s32 0, %v768
        %v770 = vrot.slane %v749, %v769
        %v772 = vmul.f32 %v765, %v770
        %v774 = vlaneseq
        %v775 = vshrl.u32 %v774, 7
        %v776 = vsub.s32 0, %v775
        %v777 = vrot.slane %v750, %v776
        %v779 = vadd.f32 %v772, %v777
        %780 = vst.msk [vmem:[#allocation2] sm:$0xff] %vm751, %v779
        loop: start=0, step=1, limit=2
        $region117: #{bert_for_sequence_classification.1} parent=115 // loop_pre_header
          _
        $region118: #{bert_for_sequence_classification.1} parent=115 // loop_header
          %s782 = sphi 0, %s786
          %p783 = scmp.ge.s32.totalorder %s782, 2
        $region119: #{bert_for_sequence_classification.1} parent=115 // loop_header_branch
          %785 = sbr.rel (%p783) target = $region123
        $region120: #{bert_for_sequence_classification.1} parent=115 // loop_body
          %v787 = vld [vmem:[#allocation2] sm:$0xff]
          %v788 = vpack.c.bf16 %v787, %v787
          %s789 = smul.u32 %s782, 4
          %s790 = smul.addr %s789, 4
          %s791 = scalar_lea.vmem %s4, %s790
          %v792 = vld [vmem:[%s791] sm:$0xf]
          %v793 = vld [vmem:[%s791 + $0x4] sm:$0xf]
          %v794 = vld [vmem:[%s791 + $0x8] sm:$0xf]
          %v795 = vld [vmem:[%s791 + $0xc] sm:$0xf]
          %s796 = smul.u32 %s782, 32
          %s797 = scalar_lea.vmem %s5, %s796
          %v798 = vld [vmem:[%s797] sm:$0xff]
          %v799 = vld [vmem:[%s797 + $0x8] sm:$0xff]
          %v800 = vld [vmem:[%s797 + $0x10] sm:$0xff]
          %v801 = vld [vmem:[%s797 + $0x18] sm:$0xff]
          %803 = vset.pattern.permute.xlu0 0
          %804 = vperm.xlu0 %803, %v798
          %v805 = vpop.permute.xlu0 %804
          %808 = vset.pattern.permute.xlu0 0
          %809 = vperm.xlu0 %808, %v799
          %v810 = vpop.permute.xlu0 %809
          %813 = vset.pattern.permute.xlu0 0
          %814 = vperm.xlu0 %813, %v800
          %v815 = vpop.permute.xlu0 %814
          %818 = vset.pattern.permute.xlu0 0
          %819 = vperm.xlu0 %818, %v801
          %v820 = vpop.permute.xlu0 %819
          %v826 = vunpack.c.l.b16 %v792
          %v827 = vunpack.c.l.b16 %v793
          %v828 = vunpack.c.l.b16 %v794
          %v829 = vunpack.c.l.b16 %v795
          %v830 = vpack.c.b16 %v827, %v826
          %v831 = vpack.c.b16 %v829, %v828
          %v833 = vsel %vm751, %v830, 0
          %v836 = vsel %vm751, %v831, 0
          %v839 = vsel %vm751, %v788, 0
          %841 = vmatprep.subr.bf16.mxu0 0
          %842 = vmatpush1.bf16.xpose.msra.mxu0 0
          %843 = vmatprep.subr.bf16.mxu0 0
          %844 = vmatpush1.bf16.xpose.msra.mxu0 0
          %845 = vmatprep.subr.bf16.mxu0 0
          %846 = vmatpush1.bf16.xpose.msra.mxu0 0
          %847 = vmatprep.subr.bf16.mxu0 0
          %848 = vmatpush1.bf16.xpose.msra.mxu0 0
          %849 = vmatprep.subr.bf16.mxu0 0
          %850 = vmatpush1.bf16.xpose.msra.mxu0 0
          %851 = vmatprep.subr.bf16.mxu0 0
          %852 = vmatpush1.bf16.xpose.msra.mxu0 0
          %853 = vmatprep.subr.bf16.mxu0 0
          %854 = vmatpush1.bf16.xpose.msra.mxu0 0
          %855 = vmatprep.subr.bf16.mxu0 0
          %856 = vmatpush1.bf16.xpose.msra.mxu0 %v839
          %857 = vmatprep.subr.bf16.mxu0 0
          %858 = vmatpush2.bf16.xpose.msra.mxu0 0
          %859 = vmatprep.subr.bf16.mxu0 0
          %860 = vmatpush2.bf16.xpose.msra.mxu0 0
          %861 = vmatprep.subr.bf16.mxu0 0
          %862 = vmatpush2.bf16.xpose.msra.mxu0 0
          %863 = vmatprep.subr.bf16.mxu0 0
          %864 = vmatpush2.bf16.xpose.msra.mxu0 0
          %865 = vmatprep.subr.bf16.mxu0 0
          %866 = vmatpush2.bf16.xpose.msra.mxu0 0
          %867 = vmatprep.subr.bf16.mxu0 0
          %868 = vmatpush2.bf16.xpose.msra.mxu0 0
          %869 = vmatprep.subr.bf16.mxu0 0
          %870 = vmatpush2.bf16.xpose.msra.mxu0 0
          %871 = vmatprep.subr.bf16.mxu0 0
          %872 = vmatpush2.bf16.xpose.msra.mxu0 0
          %873 = vmatprep.mubr.bf16.mxu0 0
          %874 = vmatmul.mubr.bf16.gmra.mxu0 %v833
          %v875 = vpop.f32.mrf.mxu0
          %v876 = vadd.f32 %v805, %v875
          %v877 = vpop.f32.mrf.mxu0
          %v878 = vpop.f32.mrf.mxu0
          %v879 = vadd.f32 %v810, %v878
          %v880 = vpop.f32.mrf.mxu0
          %881 = vmatprep.mubr.bf16.mxu0 0
          %882 = vmatmul.mubr.bf16.gmra.mxu0 %v836
          %v883 = vpop.f32.mrf.mxu0
          %v884 = vadd.f32 %v815, %v883
          %v885 = vpop.f32.mrf.mxu0
          %v886 = vpop.f32.mrf.mxu0
          %v887 = vadd.f32 %v820, %v886
          %v888 = vpop.f32.mrf.mxu0
          %889 = vdwg.mxu0
          %s890 = smul.addr %s789, 4
          %s891 = scalar_lea.vmem %s6, %s890
          %v892 = vld [vmem:[%s891] sm:$0xf]
          %v893 = vld [vmem:[%s891 + $0x4] sm:$0xf]
          %v894 = vld [vmem:[%s891 + $0x8] sm:$0xf]
          %v895 = vld [vmem:[%s891 + $0xc] sm:$0xf]
          %s896 = scalar_lea.vmem %s7, %s796
          %v897 = vld [vmem:[%s896] sm:$0xff]
          %v898 = vld [vmem:[%s896 + $0x8] sm:$0xff]
          %v899 = vld [vmem:[%s896 + $0x10] sm:$0xff]
          %v900 = vld [vmem:[%s896 + $0x18] sm:$0xff]
          %902 = vset.pattern.permute.xlu0 0
          %903 = vperm.xlu0 %902, %v897
          %v904 = vpop.permute.xlu0 %903
          %907 = vset.pattern.permute.xlu0 0
          %908 = vperm.xlu0 %907, %v898
          %v909 = vpop.permute.xlu0 %908
          %912 = vset.pattern.permute.xlu0 0
          %913 = vperm.xlu0 %912, %v899
          %v914 = vpop.permute.xlu0 %913
          %917 = vset.pattern.permute.xlu0 0
          %918 = vperm.xlu0 %917, %v900
          %v919 = vpop.permute.xlu0 %918
          %v925 = vunpack.c.l.b16 %v892
          %v926 = vunpack.c.l.b16 %v893
          %v927 = vunpack.c.l.b16 %v894
          %v928 = vunpack.c.l.b16 %v895
          %v929 = vpack.c.b16 %v926, %v925
          %v930 = vpack.c.b16 %v928, %v927
          %v932 = vsel %vm751, %v929, 0
          %v935 = vsel %vm751, %v930, 0
          %937 = vmatprep.subr.bf16.mxu0 0
          %938 = vmatpush1.bf16.xpose.msra.mxu0 0
          %939 = vmatprep.subr.bf16.mxu0 0
          %940 = vmatpush1.bf16.xpose.msra.mxu0 0
          %941 = vmatprep.subr.bf16.mxu0 0
          %942 = vmatpush1.bf16.xpose.msra.mxu0 0
          %943 = vmatprep.subr.bf16.mxu0 0
          %944 = vmatpush1.bf16.xpose.msra.mxu0 0
          %945 = vmatprep.subr.bf16.mxu0 0
          %946 = vmatpush1.bf16.xpose.msra.mxu0 0
          %947 = vmatprep.subr.bf16.mxu0 0
          %948 = vmatpush1.bf16.xpose.msra.mxu0 0
          %949 = vmatprep.subr.bf16.mxu0 0
          %950 = vmatpush1.bf16.xpose.msra.mxu0 0
          %951 = vmatprep.subr.bf16.mxu0 0
          %952 = vmatpush1.bf16.xpose.msra.mxu0 %v839
          %953 = vmatprep.subr.bf16.mxu0 0
          %954 = vmatpush2.bf16.xpose.msra.mxu0 0
          %955 = vmatprep.subr.bf16.mxu0 0
          %956 = vmatpush2.bf16.xpose.msra.mxu0 0
          %957 = vmatprep.subr.bf16.mxu0 0
          %958 = vmatpush2.bf16.xpose.msra.mxu0 0
          %959 = vmatprep.subr.bf16.mxu0 0
          %960 = vmatpush2.bf16.xpose.msra.mxu0 0
          %961 = vmatprep.subr.bf16.mxu0 0
          %962 = vmatpush2.bf16.xpose.msra.mxu0 0
          %963 = vmatprep.subr.bf16.mxu0 0
          %964 = vmatpush2.bf16.xpose.msra.mxu0 0
          %965 = vmatprep.subr.bf16.mxu0 0
          %966 = vmatpush2.bf16.xpose.msra.mxu0 0
          %967 = vmatprep.subr.bf16.mxu0 0
          %968 = vmatpush2.bf16.xpose.msra.mxu0 0
          %969 = vmatprep.mubr.bf16.mxu0 0
          %970 = vmatmul.mubr.bf16.gmra.mxu0 %v932
          %v971 = vpop.f32.mrf.mxu0
          %v972 = vadd.f32 %v904, %v971
          %v973 = vpop.f32.mrf.mxu0
          %v974 = vpop.f32.mrf.mxu0
          %v975 = vadd.f32 %v909, %v974
          %v976 = vpop.f32.mrf.mxu0
          %977 = vmatprep.mubr.bf16.mxu0 0
          %978 = vmatmul.mubr.bf16.gmra.mxu0 %v935
          %v979 = vpop.f32.mrf.mxu0
          %v980 = vadd.f32 %v914, %v979
          %v981 = vpop.f32.mrf.mxu0
          %v982 = vpop.f32.mrf.mxu0
          %v983 = vadd.f32 %v919, %v982
          %v984 = vpop.f32.mrf.mxu0
          %985 = vdwg.mxu0
          %s986 = smul.addr %s789, 4
          %s987 = scalar_lea.vmem %s8, %s986
          %v988 = vld [vmem:[%s987] sm:$0xf]
          %v989 = vld [vmem:[%s987 + $0x4] sm:$0xf]
          %v990 = vld [vmem:[%s987 + $0x8] sm:$0xf]
          %v991 = vld [vmem:[%s987 + $0xc] sm:$0xf]
          %s992 = scalar_lea.vmem %s9, %s796
          %v993 = vld [vmem:[%s992] sm:$0xff]
          %v994 = vld [vmem:[%s992 + $0x8] sm:$0xff]
          %v995 = vld [vmem:[%s992 + $0x10] sm:$0xff]
          %v996 = vld [vmem:[%s992 + $0x18] sm:$0xff]
          %998 = vset.pattern.permute.xlu0 0
          %999 = vperm.xlu0 %998, %v993
          %v1000 = vpop.permute.xlu0 %999
          %1003 = vset.pattern.permute.xlu0 0
          %1004 = vperm.xlu0 %1003, %v994
          %v1005 = vpop.permute.xlu0 %1004
          %1008 = vset.pattern.permute.xlu0 0
          %1009 = vperm.xlu0 %1008, %v995
          %v1010 = vpop.permute.xlu0 %1009
          %1013 = vset.pattern.permute.xlu0 0
          %1014 = vperm.xlu0 %1013, %v996
          %v1015 = vpop.permute.xlu0 %1014
          %v1021 = vunpack.c.l.b16 %v988
          %v1022 = vunpack.c.l.b16 %v989
          %v1023 = vunpack.c.l.b16 %v990
          %v1024 = vunpack.c.l.b16 %v991
          %v1025 = vpack.c.b16 %v1022, %v1021
          %v1026 = vpack.c.b16 %v1024, %v1023
          %v1028 = vsel %vm751, %v1025, 0
          %v1031 = vsel %vm751, %v1026, 0
          %1033 = vmatprep.subr.bf16.mxu0 0
          %1034 = vmatpush1.bf16.xpose.msra.mxu0 0
          %1035 = vmatprep.subr.bf16.mxu0 0
          %1036 = vmatpush1.bf16.xpose.msra.mxu0 0
          %1037 = vmatprep.subr.bf16.mxu0 0
          %1038 = vmatpush1.bf16.xpose.msra.mxu0 0
          %1039 = vmatprep.subr.bf16.mxu0 0
          %1040 = vmatpush1.bf16.xpose.msra.mxu0 0
          %1041 = vmatprep.subr.bf16.mxu0 0
          %1042 = vmatpush1.bf16.xpose.msra.mxu0 0
          %1043 = vmatprep.subr.bf16.mxu0 0
          %1044 = vmatpush1.bf16.xpose.msra.mxu0 0
          %1045 = vmatprep.subr.bf16.mxu0 0
          %1046 = vmatpush1.bf16.xpose.msra.mxu0 0
          %1047 = vmatprep.subr.bf16.mxu0 0
          %1048 = vmatpush1.bf16.xpose.msra.mxu0 %v839
          %1049 = vmatprep.subr.bf16.mxu0 0
          %1050 = vmatpush2.bf16.xpose.msra.mxu0 0
          %1051 = vmatprep.subr.bf16.mxu0 0
          %1052 = vmatpush2.bf16.xpose.msra.mxu0 0
          %1053 = vmatprep.subr.bf16.mxu0 0
          %1054 = vmatpush2.bf16.xpose.msra.mxu0 0
          %1055 = vmatprep.subr.bf16.mxu0 0
          %1056 = vmatpush2.bf16.xpose.msra.mxu0 0
          %1057 = vmatprep.subr.bf16.mxu0 0
          %1058 = vmatpush2.bf16.xpose.msra.mxu0 0
          %1059 = vmatprep.subr.bf16.mxu0 0
          %1060 = vmatpush2.bf16.xpose.msra.mxu0 0
          %1061 = vmatprep.subr.bf16.mxu0 0
          %1062 = vmatpush2.bf16.xpose.msra.mxu0 0
          %1063 = vmatprep.subr.bf16.mxu0 0
          %1064 = vmatpush2.bf16.xpose.msra.mxu0 0
          %1065 = vmatprep.mubr.bf16.mxu0 0
          %1066 = vmatmul.mubr.bf16.gmra.mxu0 %v1028
          %v1067 = vpop.f32.mrf.mxu0
          %v1068 = vadd.f32 %v1000, %v1067
          %v1069 = vpop.f32.mrf.mxu0
          %v1070 = vpop.f32.mrf.mxu0
          %v1071 = vadd.f32 %v1005, %v1070
          %v1072 = vpop.f32.mrf.mxu0
          %1073 = vmatprep.mubr.bf16.mxu0 0
          %1074 = vmatmul.mubr.bf16.gmra.mxu0 %v1031
          %v1075 = vpop.f32.mrf.mxu0
          %v1076 = vadd.f32 %v1010, %v1075
          %v1077 = vpop.f32.mrf.mxu0
          %v1078 = vpop.f32.mrf.mxu0
          %v1079 = vadd.f32 %v1015, %v1078
          %v1080 = vpop.f32.mrf.mxu0
          %1081 = vdwg.mxu0
          %1082 = vxpose.xlu0.b32.start [1/16] %v876, 128
          %1083 = vxpose.xlu0.b32.cont [2/16] 0.0, 128
          %1084 = vxpose.xlu0.b32.cont [3/16] 0.0, 128
          %1085 = vxpose.xlu0.b32.cont [4/16] 0.0, 128
          %1086 = vxpose.xlu0.b32.cont [5/16] 0.0, 128
          %1087 = vxpose.xlu0.b32.cont [6/16] 0.0, 128
          %1088 = vxpose.xlu0.b32.cont [7/16] 0.0, 128
          %1089 = vxpose.xlu0.b32.cont [8/16] 0.0, 128
          %1090 = vxpose.xlu0.b32.cont [9/16] 0.0, 128
          %1091 = vxpose.xlu0.b32.cont [10/16] 0.0, 128
          %1092 = vxpose.xlu0.b32.cont [11/16] 0.0, 128
          %1093 = vxpose.xlu0.b32.cont [12/16] 0.0, 128
          %1094 = vxpose.xlu0.b32.cont [13/16] 0.0, 128
          %1095 = vxpose.xlu0.b32.cont [14/16] 0.0, 128
          %1096 = vxpose.xlu0.b32.cont [15/16] 0.0, 128
          %1097 = vxpose.xlu0.b32.end [16/16] 0.0, 128
          %v1098 = vpop.trf.xlu0
          %v1099 = vpop.trf.xlu0
          %v1100 = vpop.trf.xlu0
          %v1101 = vpop.trf.xlu0
          %v1102 = vpop.trf.xlu0
          %v1103 = vpop.trf.xlu0
          %v1104 = vpop.trf.xlu0
          %v1105 = vpop.trf.xlu0
          %v1106 = vpop.trf.xlu0
          %v1107 = vpop.trf.xlu0
          %v1108 = vpop.trf.xlu0
          %v1109 = vpop.trf.xlu0
          %v1110 = vpop.trf.xlu0
          %v1111 = vpop.trf.xlu0
          %v1112 = vpop.trf.xlu0
          %v1113 = vpop.trf.xlu0
          %1114 = vxpose.xlu0.b32.start [1/16] %v879, 128
          %1115 = vxpose.xlu0.b32.cont [2/16] 0.0, 128
          %1116 = vxpose.xlu0.b32.cont [3/16] 0.0, 128
          %1117 = vxpose.xlu0.b32.cont [4/16] 0.0, 128
          %1118 = vxpose.xlu0.b32.cont [5/16] 0.0, 128
          %1119 = vxpose.xlu0.b32.cont [6/16] 0.0, 128
          %1120 = vxpose.xlu0.b32.cont [7/16] 0.0, 128
          %1121 = vxpose.xlu0.b32.cont [8/16] 0.0, 128
          %1122 = vxpose.xlu0.b32.cont [9/16] 0.0, 128
          %1123 = vxpose.xlu0.b32.cont [10/16] 0.0, 128
          %1124 = vxpose.xlu0.b32.cont [11/16] 0.0, 128
          %1125 = vxpose.xlu0.b32.cont [12/16] 0.0, 128
          %1126 = vxpose.xlu0.b32.cont [13/16] 0.0, 128
          %1127 = vxpose.xlu0.b32.cont [14/16] 0.0, 128
          %1128 = vxpose.xlu0.b32.cont [15/16] 0.0, 128
          %1129 = vxpose.xlu0.b32.end [16/16] 0.0, 128
          %v1130 = vpop.trf.xlu0
          %v1131 = vpop.trf.xlu0
          %v1132 = vpop.trf.xlu0
          %v1133 = vpop.trf.xlu0
          %v1134 = vpop.trf.xlu0
          %v1135 = vpop.trf.xlu0
          %v1136 = vpop.trf.xlu0
          %v1137 = vpop.trf.xlu0
          %v1138 = vpop.trf.xlu0
          %v1139 = vpop.trf.xlu0
          %v1140 = vpop.trf.xlu0
          %v1141 = vpop.trf.xlu0
          %v1142 = vpop.trf.xlu0
          %v1143 = vpop.trf.xlu0
          %v1144 = vpop.trf.xlu0
          %v1145 = vpop.trf.xlu0
          %1146 = vxpose.xlu0.b32.start [1/16] %v884, 128
          %1147 = vxpose.xlu0.b32.cont [2/16] 0.0, 128
          %1148 = vxpose.xlu0.b32.cont [3/16] 0.0, 128
          %1149 = vxpose.xlu0.b32.cont [4/16] 0.0, 128
          %1150 = vxpose.xlu0.b32.cont [5/16] 0.0, 128
          %1151 = vxpose.xlu0.b32.cont [6/16] 0.0, 128
          %1152 = vxpose.xlu0.b32.cont [7/16] 0.0, 128
          %1153 = vxpose.xlu0.b32.cont [8/16] 0.0, 128
          %1154 = vxpose.xlu0.b32.cont [9/16] 0.0, 128
          %1155 = vxpose.xlu0.b32.cont [10/16] 0.0, 128
          %1156 = vxpose.xlu0.b32.cont [11/16] 0.0, 128
          %1157 = vxpose.xlu0.b32.cont [12/16] 0.0, 128
          %1158 = vxpose.xlu0.b32.cont [13/16] 0.0, 128
          %1159 = vxpose.xlu0.b32.cont [14/16] 0.0, 128
          %1160 = vxpose.xlu0.b32.cont [15/16] 0.0, 128
          %1161 = vxpose.xlu0.b32.end [16/16] 0.0, 128
          %v1162 = vpop.trf.xlu0
          %v1163 = vpop.trf.xlu0
          %v1164 = vpop.trf.xlu0
          %v1165 = vpop.trf.xlu0
          %v1166 = vpop.trf.xlu0
          %v1167 = vpop.trf.xlu0
          %v1168 = vpop.trf.xlu0
          %v1169 = vpop.trf.xlu0
          %v1170 = vpop.trf.xlu0
          %v1171 = vpop.trf.xlu0
          %v1172 = vpop.trf.xlu0
          %v1173 = vpop.trf.xlu0
          %v1174 = vpop.trf.xlu0
          %v1175 = vpop.trf.xlu0
          %v1176 = vpop.trf.xlu0
          %v1177 = vpop.trf.xlu0
          %1178 = vxpose.xlu0.b32.start [1/16] %v887, 128
          %1179 = vxpose.xlu0.b32.cont [2/16] 0.0, 128
          %1180 = vxpose.xlu0.b32.cont [3/16] 0.0, 128
          %1181 = vxpose.xlu0.b32.cont [4/16] 0.0, 128
          %1182 = vxpose.xlu0.b32.cont [5/16] 0.0, 128
          %1183 = vxpose.xlu0.b32.cont [6/16] 0.0, 128
          %1184 = vxpose.xlu0.b32.cont [7/16] 0.0, 128
          %1185 = vxpose.xlu0.b32.cont [8/16] 0.0, 128
          %1186 = vxpose.xlu0.b32.cont [9/16] 0.0, 128
          %1187 = vxpose.xlu0.b32.cont [10/16] 0.0, 128
          %1188 = vxpose.xlu0.b32.cont [11/16] 0.0, 128
          %1189 = vxpose.xlu0.b32.cont [12/16] 0.0, 128
          %1190 = vxpose.xlu0.b32.cont [13/16] 0.0, 128
          %1191 = vxpose.xlu0.b32.cont [14/16] 0.0, 128
          %1192 = vxpose.xlu0.b32.cont [15/16] 0.0, 128
          %1193 = vxpose.xlu0.b32.end [16/16] 0.0, 128
          %v1194 = vpop.trf.xlu0
          %v1195 = vpop.trf.xlu0
          %v1196 = vpop.trf.xlu0
          %v1197 = vpop.trf.xlu0
          %v1198 = vpop.trf.xlu0
          %v1199 = vpop.trf.xlu0
          %v1200 = vpop.trf.xlu0
          %v1201 = vpop.trf.xlu0
          %v1202 = vpop.trf.xlu0
          %v1203 = vpop.trf.xlu0
          %v1204 = vpop.trf.xlu0
          %v1205 = vpop.trf.xlu0
          %v1206 = vpop.trf.xlu0
          %v1207 = vpop.trf.xlu0
          %v1208 = vpop.trf.xlu0
          %v1209 = vpop.trf.xlu0
          %v1210 = vpack.c.bf16 %v1098, %v1098
          %v1211 = vpack.c.bf16 %v1130, %v1130
          %v1212 = vpack.c.bf16 %v1162, %v1162
          %v1213 = vpack.c.bf16 %v1194, %v1194
          %v1214 = vpack.c.bf16 %v972, %v972
          %v1215 = vpack.c.bf16 %v975, %v975
          %v1216 = vpack.c.bf16 %v980, %v980
          %v1217 = vpack.c.bf16 %v983, %v983
          %vm1218 = vcmask 64512
          %v1220 = vsel %vm1218, %v1210, 0
          %vm1222 = vcmask 1043456
          %v1224 = vsel %vm1222, %v1214, 0
          %1226 = vmatprep.subr.bf16.mxu0 0
          %1227 = vmatpush1.bf16.msra.mxu0 0
          %1228 = vmatprep.subr.bf16.mxu0 0
          %1229 = vmatpush1.bf16.msra.mxu0 0
          %1230 = vmatprep.subr.bf16.mxu0 0
          %1231 = vmatpush1.bf16.msra.mxu0 0
          %1232 = vmatprep.subr.bf16.mxu0 0
          %1233 = vmatpush1.bf16.msra.mxu0 0
          %1234 = vmatprep.subr.bf16.mxu0 0
          %1235 = vmatpush1.bf16.msra.mxu0 0
          %1236 = vmatprep.subr.bf16.mxu0 0
          %1237 = vmatpush1.bf16.msra.mxu0 0
          %1238 = vmatprep.subr.bf16.mxu0 0
          %1239 = vmatpush1.bf16.msra.mxu0 0
          %1240 = vmatprep.subr.bf16.mxu0 0
          %1241 = vmatpush1.bf16.msra.mxu0 %v1224
          %1242 = vmatprep.subr.bf16.mxu0 0
          %1243 = vmatpush2.bf16.msra.mxu0 0
          %1244 = vmatprep.subr.bf16.mxu0 0
          %1245 = vmatpush2.bf16.msra.mxu0 0
          %1246 = vmatprep.subr.bf16.mxu0 0
          %1247 = vmatpush2.bf16.msra.mxu0 0
          %1248 = vmatprep.subr.bf16.mxu0 0
          %1249 = vmatpush2.bf16.msra.mxu0 0
          %1250 = vmatprep.subr.bf16.mxu0 0
          %1251 = vmatpush2.bf16.msra.mxu0 0
          %1252 = vmatprep.subr.bf16.mxu0 0
          %1253 = vmatpush2.bf16.msra.mxu0 0
          %1254 = vmatprep.subr.bf16.mxu0 0
          %1255 = vmatpush2.bf16.msra.mxu0 0
          %1256 = vmatprep.subr.bf16.mxu0 0
          %1257 = vmatpush2.bf16.msra.mxu0 0
          %1258 = vmatprep.mubr.bf16.mxu0 0
          %1259 = vmatmul.mubr.bf16.gmra.mxu0 %v1220
          %v1260 = vpop.f32.mrf.mxu0
          %v1261 = vadd.f32 0.0, %v1260
          %v1262 = vpop.f32.mrf.mxu0
          %v1263 = vpop.f32.mrf.mxu0
          %v1264 = vpop.f32.mrf.mxu0
          %1265 = vdwg.mxu0
          %v1267 = vsel %vm1218, %v1211, 0
          %v1270 = vsel %vm1222, %v1215, 0
          %1272 = vmatprep.subr.bf16.mxu0 0
          %1273 = vmatpush1.bf16.msra.mxu0 0
          %1274 = vmatprep.subr.bf16.mxu0 0
          %1275 = vmatpush1.bf16.msra.mxu0 0
          %1276 = vmatprep.subr.bf16.mxu0 0
          %1277 = vmatpush1.bf16.msra.mxu0 0
          %1278 = vmatprep.subr.bf16.mxu0 0
          %1279 = vmatpush1.bf16.msra.mxu0 0
          %1280 = vmatprep.subr.bf16.mxu0 0
          %1281 = vmatpush1.bf16.msra.mxu0 0
          %1282 = vmatprep.subr.bf16.mxu0 0
          %1283 = vmatpush1.bf16.msra.mxu0 0
          %1284 = vmatprep.subr.bf16.mxu0 0
          %1285 = vmatpush1.bf16.msra.mxu0 0
          %1286 = vmatprep.subr.bf16.mxu0 0
          %1287 = vmatpush1.bf16.msra.mxu0 %v1270
          %1288 = vmatprep.subr.bf16.mxu0 0
          %1289 = vmatpush2.bf16.msra.mxu0 0
          %1290 = vmatprep.subr.bf16.mxu0 0
          %1291 = vmatpush2.bf16.msra.mxu0 0
          %1292 = vmatprep.subr.bf16.mxu0 0
          %1293 = vmatpush2.bf16.msra.mxu0 0
          %1294 = vmatprep.subr.bf16.mxu0 0
          %1295 = vmatpush2.bf16.msra.mxu0 0
          %1296 = vmatprep.subr.bf16.mxu0 0
          %1297 = vmatpush2.bf16.msra.mxu0 0
          %1298 = vmatprep.subr.bf16.mxu0 0
          %1299 = vmatpush2.bf16.msra.mxu0 0
          %1300 = vmatprep.subr.bf16.mxu0 0
          %1301 = vmatpush2.bf16.msra.mxu0 0
          %1302 = vmatprep.subr.bf16.mxu0 0
          %1303 = vmatpush2.bf16.msra.mxu0 0
          %1304 = vmatprep.mubr.bf16.mxu0 0
          %1305 = vmatmul.mubr.bf16.gmra.mxu0 %v1267
          %v1306 = vpop.f32.mrf.mxu0
          %v1307 = vadd.f32 0.0, %v1306
          %v1308 = vpop.f32.mrf.mxu0
          %v1309 = vpop.f32.mrf.mxu0
          %v1310 = vpop.f32.mrf.mxu0
          %1311 = vdwg.mxu0
          %v1313 = vsel %vm1218, %v1212, 0
          %v1316 = vsel %vm1222, %v1216, 0
          %1318 = vmatprep.subr.bf16.mxu0 0
          %1319 = vmatpush1.bf16.msra.mxu0 0
          %1320 = vmatprep.subr.bf16.mxu0 0
          %1321 = vmatpush1.bf16.msra.mxu0 0
          %1322 = vmatprep.subr.bf16.mxu0 0
          %1323 = vmatpush1.bf16.msra.mxu0 0
          %1324 = vmatprep.subr.bf16.mxu0 0
          %1325 = vmatpush1.bf16.msra.mxu0 0
          %1326 = vmatprep.subr.bf16.mxu0 0
          %1327 = vmatpush1.bf16.msra.mxu0 0
          %1328 = vmatprep.subr.bf16.mxu0 0
          %1329 = vmatpush1.bf16.msra.mxu0 0
          %1330 = vmatprep.subr.bf16.mxu0 0
          %1331 = vmatpush1.bf16.msra.mxu0 0
          %1332 = vmatprep.subr.bf16.mxu0 0
          %1333 = vmatpush1.bf16.msra.mxu0 %v1316
          %1334 = vmatprep.subr.bf16.mxu0 0
          %1335 = vmatpush2.bf16.msra.mxu0 0
          %1336 = vmatprep.subr.bf16.mxu0 0
          %1337 = vmatpush2.bf16.msra.mxu0 0
          %1338 = vmatprep.subr.bf16.mxu0 0
          %1339 = vmatpush2.bf16.msra.mxu0 0
          %1340 = vmatprep.subr.bf16.mxu0 0
          %1341 = vmatpush2.bf16.msra.mxu0 0
          %1342 = vmatprep.subr.bf16.mxu0 0
          %1343 = vmatpush2.bf16.msra.mxu0 0
          %1344 = vmatprep.subr.bf16.mxu0 0
          %1345 = vmatpush2.bf16.msra.mxu0 0
          %1346 = vmatprep.subr.bf16.mxu0 0
          %1347 = vmatpush2.bf16.msra.mxu0 0
          %1348 = vmatprep.subr.bf16.mxu0 0
          %1349 = vmatpush2.bf16.msra.mxu0 0
          %1350 = vmatprep.mubr.bf16.mxu0 0
          %1351 = vmatmul.mubr.bf16.gmra.mxu0 %v1313
          %v1352 = vpop.f32.mrf.mxu0
          %v1353 = vadd.f32 0.0, %v1352
          %v1354 = vpop.f32.mrf.mxu0
          %v1355 = vpop.f32.mrf.mxu0
          %v1356 = vpop.f32.mrf.mxu0
          %1357 = vdwg.mxu0
          %v1359 = vsel %vm1218, %v1213, 0
          %v1362 = vsel %vm1222, %v1217, 0
          %1364 = vmatprep.subr.bf16.mxu0 0
          %1365 = vmatpush1.bf16.msra.mxu0 0
          %1366 = vmatprep.subr.bf16.mxu0 0
          %1367 = vmatpush1.bf16.msra.mxu0 0
          %1368 = vmatprep.subr.bf16.mxu0 0
          %1369 = vmatpush1.bf16.msra.mxu0 0
          %1370 = vmatprep.subr.bf16.mxu0 0
          %1371 = vmatpush1.bf16.msra.mxu0 0
          %1372 = vmatprep.subr.bf16.mxu0 0
          %1373 = vmatpush1.bf16.msra.mxu0 0
          %1374 = vmatprep.subr.bf16.mxu0 0
          %1375 = vmatpush1.bf16.msra.mxu0 0
          %1376 = vmatprep.subr.bf16.mxu0 0
          %1377 = vmatpush1.bf16.msra.mxu0 0
          %1378 = vmatprep.subr.bf16.mxu0 0
          %1379 = vmatpush1.bf16.msra.mxu0 %v1362
          %1380 = vmatprep.subr.bf16.mxu0 0
          %1381 = vmatpush2.bf16.msra.mxu0 0
          %1382 = vmatprep.subr.bf16.mxu0 0
          %1383 = vmatpush2.bf16.msra.mxu0 0
          %1384 = vmatprep.subr.bf16.mxu0 0
          %1385 = vmatpush2.bf16.msra.mxu0 0
          %1386 = vmatprep.subr.bf16.mxu0 0
          %1387 = vmatpush2.bf16.msra.mxu0 0
          %1388 = vmatprep.subr.bf16.mxu0 0
          %1389 = vmatpush2.bf16.msra.mxu0 0
          %1390 = vmatprep.subr.bf16.mxu0 0
          %1391 = vmatpush2.bf16.msra.mxu0 0
          %1392 = vmatprep.subr.bf16.mxu0 0
          %1393 = vmatpush2.bf16.msra.mxu0 0
          %1394 = vmatprep.subr.bf16.mxu0 0
          %1395 = vmatpush2.bf16.msra.mxu0 0
          %1396 = vmatprep.mubr.bf16.mxu0 0
          %1397 = vmatmul.mubr.bf16.gmra.mxu0 %v1359
          %v1398 = vpop.f32.mrf.mxu0
          %v1399 = vadd.f32 0.0, %v1398
          %v1400 = vpop.f32.mrf.mxu0
          %v1401 = vpop.f32.mrf.mxu0
          %v1402 = vpop.f32.mrf.mxu0
          %1403 = vdwg.mxu0
          %v1404 = vmul.f32 %v1261, 0.35355338
          %v1405 = vmul.f32 %v1307, 0.35355338
          %v1406 = vmul.f32 %v1353, 0.35355338
          %v1407 = vmul.f32 %v1399, 0.35355338
          %v1409 = vlaneseq
          %v1410 = vshrl.u32 %v1409, 7
          %v1411 = vsub.s32 0, %v1410
          %v1412 = vrot.slane %v747, %v1411
          %v1414 = vadd.f32 %v1404, %v1412
          %v1415 = vadd.f32 %v1405, %v1412
          %v1416 = vadd.f32 %v1406, %v1412
          %v1417 = vadd.f32 %v1407, %v1412
          %v1418 = vsel %vm1218, %v1414, -inf
          %1419 = vmax.xlane.f32.xlu0 %v1418
          %v1420 = vpop.xlane.xlu0 %1419
          %v1421 = vsel %vm1218, %v1415, -inf
          %1422 = vmax.xlane.f32.xlu0 %v1421
          %v1423 = vpop.xlane.xlu0 %1422
          %v1424 = vsel %vm1218, %v1416, -inf
          %1425 = vmax.xlane.f32.xlu0 %v1424
          %v1426 = vpop.xlane.xlu0 %1425
          %v1427 = vsel %vm1218, %v1417, -inf
          %1428 = vmax.xlane.f32.xlu0 %v1427
          %v1429 = vpop.xlane.xlu0 %1428
          %v1430 = vsub.f32 %v1414, %v1420
          %v1431 = vsub.f32 %v1415, %v1423
          %v1432 = vsub.f32 %v1416, %v1426
          %v1433 = vsub.f32 %v1417, %v1429
          %v1434 = vmul.f32 %v1430, 1.442695
          %v1435 = vpow.pop %v1434
          %v1436 = vmul.f32 %v1431, 1.442695
          %v1437 = vpow.pop %v1436
          %v1438 = vmul.f32 %v1432, 1.442695
          %v1439 = vpow.pop %v1438
          %v1440 = vmul.f32 %v1433, 1.442695
          %v1441 = vpow.pop %v1440
          %v1442 = vsel %vm1218, %v1435, 0.0
          %1443 = vadd.xlane.f32.xlu0 %v1442
          %v1444 = vpop.xlane.xlu0 %1443
          %v1445 = vsel %vm1218, %v1437, 0.0
          %1446 = vadd.xlane.f32.xlu0 %v1445
          %v1447 = vpop.xlane.xlu0 %1446
          %v1448 = vsel %vm1218, %v1439, 0.0
          %1449 = vadd.xlane.f32.xlu0 %v1448
          %v1450 = vpop.xlane.xlu0 %1449
          %v1451 = vsel %vm1218, %v1441, 0.0
          %1452 = vadd.xlane.f32.xlu0 %v1451
          %v1453 = vpop.xlane.xlu0 %1452
          %v1454 = vrcp.pop %v1444
          %v1455 = vrcp.pop %v1447
          %v1456 = vrcp.pop %v1450
          %v1457 = vrcp.pop %v1453
          %v1458 = vmul.f32 %v1435, %v1454
          %v1459 = vmul.f32 %v1437, %v1455
          %v1460 = vmul.f32 %v1439, %v1456
          %v1461 = vmul.f32 %v1441, %v1457
          %v1462 = vpack.c.bf16 %v1068, %v1068
          %v1463 = vpack.c.bf16 %v1071, %v1071
          %v1464 = vpack.c.bf16 %v1076, %v1076
          %v1465 = vpack.c.bf16 %v1079, %v1079
          %v1466 = vpack.c.bf16 %v1458, %v1458
          %v1467 = vpack.c.bf16 %v1459, %v1459
          %v1468 = vpack.c.bf16 %v1460, %v1460
          %v1469 = vpack.c.bf16 %v1461, %v1461
          %v1471 = vsel %vm1218, %v1462, 0
          %v1474 = vsel %vm1218, %v1466, 0
          %1476 = vmatprep.subr.bf16.mxu0 0
          %1477 = vmatpush1.bf16.xpose.msra.mxu0 0
          %1478 = vmatprep.subr.bf16.mxu0 0
          %1479 = vmatpush1.bf16.xpose.msra.mxu0 0
          %1480 = vmatprep.subr.bf16.mxu0 0
          %1481 = vmatpush1.bf16.xpose.msra.mxu0 0
          %1482 = vmatprep.subr.bf16.mxu0 0
          %1483 = vmatpush1.bf16.xpose.msra.mxu0 0
          %1484 = vmatprep.subr.bf16.mxu0 0
          %1485 = vmatpush1.bf16.xpose.msra.mxu0 0
          %1486 = vmatprep.subr.bf16.mxu0 0
          %1487 = vmatpush1.bf16.xpose.msra.mxu0 0
          %1488 = vmatprep.subr.bf16.mxu0 0
          %1489 = vmatpush1.bf16.xpose.msra.mxu0 0
          %1490 = vmatprep.subr.bf16.mxu0 0
          %1491 = vmatpush1.bf16.xpose.msra.mxu0 %v1474
          %1492 = vmatprep.subr.bf16.mxu0 0
          %1493 = vmatpush2.bf16.xpose.msra.mxu0 0
          %1494 = vmatprep.subr.bf16.mxu0 0
          %1495 = vmatpush2.bf16.xpose.msra.mxu0 0
          %1496 = vmatprep.subr.bf16.mxu0 0
          %1497 = vmatpush2.bf16.xpose.msra.mxu0 0
          %1498 = vmatprep.subr.bf16.mxu0 0
          %1499 = vmatpush2.bf16.xpose.msra.mxu0 0
          %1500 = vmatprep.subr.bf16.mxu0 0
          %1501 = vmatpush2.bf16.xpose.msra.mxu0 0
          %1502 = vmatprep.subr.bf16.mxu0 0
          %1503 = vmatpush2.bf16.xpose.msra.mxu0 0
          %1504 = vmatprep.subr.bf16.mxu0 0
          %1505 = vmatpush2.bf16.xpose.msra.mxu0 0
          %1506 = vmatprep.subr.bf16.mxu0 0
          %1507 = vmatpush2.bf16.xpose.msra.mxu0 0
          %1508 = vmatprep.mubr.bf16.mxu0 0
          %1509 = vmatmul.mubr.bf16.gmra.mxu0 %v1471
          %v1510 = vpop.f32.mrf.mxu0
          %v1511 = vadd.f32 0.0, %v1510
          %v1512 = vpop.f32.mrf.mxu0
          %v1513 = vpop.f32.mrf.mxu0
          %v1514 = vpop.f32.mrf.mxu0
          %1515 = vdwg.mxu0
          %v1517 = vsel %vm1218, %v1463, 0
          %v1520 = vsel %vm1218, %v1467, 0
          %1522 = vmatprep.subr.bf16.mxu0 0
          %1523 = vmatpush1.bf16.xpose.msra.mxu0 0
          %1524 = vmatprep.subr.bf16.mxu0 0
          %1525 = vmatpush1.bf16.xpose.msra.mxu0 0
          %1526 = vmatprep.subr.bf16.mxu0 0
          %1527 = vmatpush1.bf16.xpose.msra.mxu0 0
          %1528 = vmatprep.subr.bf16.mxu0 0
          %1529 = vmatpush1.bf16.xpose.msra.mxu0 0
          %1530 = vmatprep.subr.bf16.mxu0 0
          %1531 = vmatpush1.bf16.xpose.msra.mxu0 0
          %1532 = vmatprep.subr.bf16.mxu0 0
          %1533 = vmatpush1.bf16.xpose.msra.mxu0 0
          %1534 = vmatprep.subr.bf16.mxu0 0
          %1535 = vmatpush1.bf16.xpose.msra.mxu0 0
          %1536 = vmatprep.subr.bf16.mxu0 0
          %1537 = vmatpush1.bf16.xpose.msra.mxu0 %v1520
          %1538 = vmatprep.subr.bf16.mxu0 0
          %1539 = vmatpush2.bf16.xpose.msra.mxu0 0
          %1540 = vmatprep.subr.bf16.mxu0 0
          %1541 = vmatpush2.bf16.xpose.msra.mxu0 0
          %1542 = vmatprep.subr.bf16.mxu0 0
          %1543 = vmatpush2.bf16.xpose.msra.mxu0 0
          %1544 = vmatprep.subr.bf16.mxu0 0
          %1545 = vmatpush2.bf16.xpose.msra.mxu0 0
          %1546 = vmatprep.subr.bf16.mxu0 0
          %1547 = vmatpush2.bf16.xpose.msra.mxu0 0
          %1548 = vmatprep.subr.bf16.mxu0 0
          %1549 = vmatpush2.bf16.xpose.msra.mxu0 0
          %1550 = vmatprep.subr.bf16.mxu0 0
          %1551 = vmatpush2.bf16.xpose.msra.mxu0 0
          %1552 = vmatprep.subr.bf16.mxu0 0
          %1553 = vmatpush2.bf16.xpose.msra.mxu0 0
          %1554 = vmatprep.mubr.bf16.mxu0 0
          %1555 = vmatmul.mubr.bf16.gmra.mxu0 %v1517
          %v1556 = vpop.f32.mrf.mxu0
          %v1557 = vadd.f32 0.0, %v1556
          %v1558 = vpop.f32.mrf.mxu0
          %v1559 = vpop.f32.mrf.mxu0
          %v1560 = vpop.f32.mrf.mxu0
          %1561 = vdwg.mxu0
          %v1563 = vsel %vm1218, %v1464, 0
          %v1566 = vsel %vm1218, %v1468, 0
          %1568 = vmatprep.subr.bf16.mxu0 0
          %1569 = vmatpush1.bf16.xpose.msra.mxu0 0
          %1570 = vmatprep.subr.bf16.mxu0 0
          %1571 = vmatpush1.bf16.xpose.msra.mxu0 0
          %1572 = vmatprep.subr.bf16.mxu0 0
          %1573 = vmatpush1.bf16.xpose.msra.mxu0 0
          %1574 = vmatprep.subr.bf16.mxu0 0
          %1575 = vmatpush1.bf16.xpose.msra.mxu0 0
          %1576 = vmatprep.subr.bf16.mxu0 0
          %1577 = vmatpush1.bf16.xpose.msra.mxu0 0
          %1578 = vmatprep.subr.bf16.mxu0 0
          %1579 = vmatpush1.bf16.xpose.msra.mxu0 0
          %1580 = vmatprep.subr.bf16.mxu0 0
          %1581 = vmatpush1.bf16.xpose.msra.mxu0 0
          %1582 = vmatprep.subr.bf16.mxu0 0
          %1583 = vmatpush1.bf16.xpose.msra.mxu0 %v1566
          %1584 = vmatprep.subr.bf16.mxu0 0
          %1585 = vmatpush2.bf16.xpose.msra.mxu0 0
          %1586 = vmatprep.subr.bf16.mxu0 0
          %1587 = vmatpush2.bf16.xpose.msra.mxu0 0
          %1588 = vmatprep.subr.bf16.mxu0 0
          %1589 = vmatpush2.bf16.xpose.msra.mxu0 0
          %1590 = vmatprep.subr.bf16.mxu0 0
          %1591 = vmatpush2.bf16.xpose.msra.mxu0 0
          %1592 = vmatprep.subr.bf16.mxu0 0
          %1593 = vmatpush2.bf16.xpose.msra.mxu0 0
          %1594 = vmatprep.subr.bf16.mxu0 0
          %1595 = vmatpush2.bf16.xpose.msra.mxu0 0
          %1596 = vmatprep.subr.bf16.mxu0 0
          %1597 = vmatpush2.bf16.xpose.msra.mxu0 0
          %1598 = vmatprep.subr.bf16.mxu0 0
          %1599 = vmatpush2.bf16.xpose.msra.mxu0 0
          %1600 = vmatprep.mubr.bf16.mxu0 0
          %1601 = vmatmul.mubr.bf16.gmra.mxu0 %v1563
          %v1602 = vpop.f32.mrf.mxu0
          %v1603 = vadd.f32 0.0, %v1602
          %v1604 = vpop.f32.mrf.mxu0
          %v1605 = vpop.f32.mrf.mxu0
          %v1606 = vpop.f32.mrf.mxu0
          %1607 = vdwg.mxu0
          %v1609 = vsel %vm1218, %v1465, 0
          %v1612 = vsel %vm1218, %v1469, 0
          %1614 = vmatprep.subr.bf16.mxu0 0
          %1615 = vmatpush1.bf16.xpose.msra.mxu0 0
          %1616 = vmatprep.subr.bf16.mxu0 0
          %1617 = vmatpush1.bf16.xpose.msra.mxu0 0
          %1618 = vmatprep.subr.bf16.mxu0 0
          %1619 = vmatpush1.bf16.xpose.msra.mxu0 0
          %1620 = vmatprep.subr.bf16.mxu0 0
          %1621 = vmatpush1.bf16.xpose.msra.mxu0 0
          %1622 = vmatprep.subr.bf16.mxu0 0
          %1623 = vmatpush1.bf16.xpose.msra.mxu0 0
          %1624 = vmatprep.subr.bf16.mxu0 0
          %1625 = vmatpush1.bf16.xpose.msra.mxu0 0
          %1626 = vmatprep.subr.bf16.mxu0 0
          %1627 = vmatpush1.bf16.xpose.msra.mxu0 0
          %1628 = vmatprep.subr.bf16.mxu0 0
          %1629 = vmatpush1.bf16.xpose.msra.mxu0 %v1612
          %1630 = vmatprep.subr.bf16.mxu0 0
          %1631 = vmatpush2.bf16.xpose.msra.mxu0 0
          %1632 = vmatprep.subr.bf16.mxu0 0
          %1633 = vmatpush2.bf16.xpose.msra.mxu0 0
          %1634 = vmatprep.subr.bf16.mxu0 0
          %1635 = vmatpush2.bf16.xpose.msra.mxu0 0
          %1636 = vmatprep.subr.bf16.mxu0 0
          %1637 = vmatpush2.bf16.xpose.msra.mxu0 0
          %1638 = vmatprep.subr.bf16.mxu0 0
          %1639 = vmatpush2.bf16.xpose.msra.mxu0 0
          %1640 = vmatprep.subr.bf16.mxu0 0
          %1641 = vmatpush2.bf16.xpose.msra.mxu0 0
          %1642 = vmatprep.subr.bf16.mxu0 0
          %1643 = vmatpush2.bf16.xpose.msra.mxu0 0
          %1644 = vmatprep.subr.bf16.mxu0 0
          %1645 = vmatpush2.bf16.xpose.msra.mxu0 0
          %1646 = vmatprep.mubr.bf16.mxu0 0
          %1647 = vmatmul.mubr.bf16.gmra.mxu0 %v1609
          %v1648 = vpop.f32.mrf.mxu0
          %v1649 = vadd.f32 0.0, %v1648
          %v1650 = vpop.f32.mrf.mxu0
          %v1651 = vpop.f32.mrf.mxu0
          %v1652 = vpop.f32.mrf.mxu0
          %1653 = vdwg.mxu0
          %v1654 = vpack.c.bf16 %v1557, %v1511
          %v1655 = vpack.c.bf16 %v1649, %v1603
          %s1656 = smul.addr %s789, 4
          %s1657 = scalar_lea.vmem %s10, %s1656
          %v1658 = vld [vmem:[%s1657] sm:$0xf]
          %v1659 = vld [vmem:[%s1657 + $0x4] sm:$0xf]
          %v1660 = vld [vmem:[%s1657 + $0x8] sm:$0xf]
          %v1661 = vld [vmem:[%s1657 + $0xc] sm:$0xf]
          %s1662 = scalar_lea.vmem %s11, %s782
          %v1663 = vld [vmem:[%s1662] sm:$0x1]
          %v1665 = vlaneseq
          %v1666 = vshrl.u32 %v1665, 7
          %v1667 = vsub.s32 0, %v1666
          %v1668 = vrot.slane %v1663, %v1667
          %1670 = vxpose.xlu0.c.b16.start [1/8] %v1654, 128
          %1671 = vxpose.xlu0.c.b16.cont [2/8] %v1655, 128
          %1672 = vxpose.xlu0.c.b16.cont [3/8] 0, 128
          %1673 = vxpose.xlu0.c.b16.cont [4/8] 0, 128
          %1674 = vxpose.xlu0.c.b16.cont [5/8] 0, 128
          %1675 = vxpose.xlu0.c.b16.cont [6/8] 0, 128
          %1676 = vxpose.xlu0.c.b16.cont [7/8] 0, 128
          %1677 = vxpose.xlu0.c.b16.end [8/8] 0, 128
          %v1678 = vpop.trf.xlu0
          %v1679 = vpop.trf.xlu0
          %v1680 = vpop.trf.xlu0
          %v1681 = vpop.trf.xlu0
          %v1682 = vpop.trf.xlu0
          %v1683 = vpop.trf.xlu0
          %v1684 = vpop.trf.xlu0
          %v1685 = vpop.trf.xlu0
          %v1690 = vunpack.c.l.b16 %v1658
          %v1691 = vunpack.c.l.b16 %v1659
          %v1692 = vunpack.c.l.b16 %v1660
          %v1693 = vunpack.c.l.b16 %v1661
          %v1694 = vpack.c.b16 %v1691, %v1690
          %v1695 = vpack.c.b16 %v1693, %v1692
          %v1699 = vsel %vm751, %v1678, 0
          %1701 = vmatprep.subr.bf16.mxu0 0
          %1702 = vmatpush1.bf16.msra.mxu0 0
          %1703 = vmatprep.subr.bf16.mxu0 0
          %1704 = vmatpush1.bf16.msra.mxu0 0
          %1705 = vmatprep.subr.bf16.mxu0 0
          %1706 = vmatpush1.bf16.msra.mxu0 0
          %1707 = vmatprep.subr.bf16.mxu0 0
          %1708 = vmatpush1.bf16.msra.mxu0 0
          %1709 = vmatprep.subr.bf16.mxu0 0
          %1710 = vmatpush1.bf16.msra.mxu0 0
          %1711 = vmatprep.subr.bf16.mxu0 0
          %1712 = vmatpush1.bf16.msra.mxu0 0
          %1713 = vmatprep.subr.bf16.mxu0 0
          %1714 = vmatpush1.bf16.msra.mxu0 %v1695
          %1715 = vmatprep.subr.bf16.mxu0 0
          %1716 = vmatpush1.bf16.msra.mxu0 %v1694
          %1717 = vmatprep.subr.bf16.mxu0 0
          %1718 = vmatpush2.bf16.msra.mxu0 0
          %1719 = vmatprep.subr.bf16.mxu0 0
          %1720 = vmatpush2.bf16.msra.mxu0 0
          %1721 = vmatprep.subr.bf16.mxu0 0
          %1722 = vmatpush2.bf16.msra.mxu0 0
          %1723 = vmatprep.subr.bf16.mxu0 0
          %1724 = vmatpush2.bf16.msra.mxu0 0
          %1725 = vmatprep.subr.bf16.mxu0 0
          %1726 = vmatpush2.bf16.msra.mxu0 0
          %1727 = vmatprep.subr.bf16.mxu0 0
          %1728 = vmatpush2.bf16.msra.mxu0 0
          %1729 = vmatprep.subr.bf16.mxu0 0
          %1730 = vmatpush2.bf16.msra.mxu0 0
          %1731 = vmatprep.subr.bf16.mxu0 0
          %1732 = vmatpush2.bf16.msra.mxu0 0
          %1733 = vmatprep.mubr.bf16.mxu0 0
          %1734 = vmatmul.mubr.bf16.gmra.mxu0 %v1699
          %v1735 = vpop.f32.mrf.mxu0
          %v1736 = vadd.f32 %v1668, %v1735
          %v1737 = vpop.f32.mrf.mxu0
          %v1738 = vpop.f32.mrf.mxu0
          %v1739 = vpop.f32.mrf.mxu0
          %1740 = vdwg.mxu0
          %v1741 = vadd.f32 %v787, %v1736
          %s1742 = scalar_lea.vmem %s12, %s782
          %v1743 = vld [vmem:[%s1742] sm:$0x1]
          %s1744 = scalar_lea.vmem %s13, %s782
          %v1745 = vld [vmem:[%s1744] sm:$0x1]
          %v1746 = vsel %vm751, %v1741, 0.0
          %1747 = vadd.xlane.f32.xlu0 %v1746
          %v1748 = vpop.xlane.xlu0 %1747
          %v1749 = vmul.f32 %v1748, %v755
          %v1750 = vsub.f32 %v1741, %v1749
          %v1751 = vmul.f32 %v1750, %v1750
          %v1752 = vsel %vm751, %v1751, 0.0
          %1753 = vadd.xlane.f32.xlu0 %v1752
          %v1754 = vpop.xlane.xlu0 %1753
          %v1755 = vmul.f32 %v1754, %v755
          %v1756 = vadd.f32 %v1755, 1e-12
          %v1757 = vrsqrt.pop %v1756
          %v1758 = vmul.f32 %v1750, %v1757
          %v1760 = vlaneseq
          %v1761 = vshrl.u32 %v1760, 7
          %v1762 = vsub.s32 0, %v1761
          %v1763 = vrot.slane %v1743, %v1762
          %v1765 = vmul.f32 %v1758, %v1763
          %v1767 = vlaneseq
          %v1768 = vshrl.u32 %v1767, 7
          %v1769 = vsub.s32 0, %v1768
          %v1770 = vrot.slane %v1745, %v1769
          %v1772 = vadd.f32 %v1765, %v1770
          %v1773 = vpack.c.bf16 %v1772, %v1772
          %s1774 = smul.addr %s789, 4
          %s1775 = scalar_lea.vmem %s14, %s1774
          %v1776 = vld [vmem:[%s1775] sm:$0xf]
          %v1777 = vld [vmem:[%s1775 + $0x4] sm:$0xf]
          %v1778 = vld [vmem:[%s1775 + $0x8] sm:$0xf]
          %v1779 = vld [vmem:[%s1775 + $0xc] sm:$0xf]
          %s1780 = scalar_lea.vmem %s15, %s782
          %v1781 = vld [vmem:[%s1780] sm:$0x1]
          %v1783 = vlaneseq
          %v1784 = vshrl.u32 %v1783, 7
          %v1785 = vsub.s32 0, %v1784
          %v1786 = vrot.slane %v1781, %v1785
          %v1792 = vunpack.c.l.b16 %v1776
          %v1793 = vunpack.c.l.b16 %v1777
          %v1794 = vunpack.c.l.b16 %v1778
          %v1795 = vunpack.c.l.b16 %v1779
          %v1796 = vpack.c.b16 %v1793, %v1792
          %v1797 = vpack.c.b16 %v1795, %v1794
          %v1801 = vsel %vm751, %v1773, 0
          %1803 = vmatprep.subr.bf16.mxu0 0
          %1804 = vmatpush1.bf16.msra.mxu0 0
          %1805 = vmatprep.subr.bf16.mxu0 0
          %1806 = vmatpush1.bf16.msra.mxu0 0
          %1807 = vmatprep.subr.bf16.mxu0 0
          %1808 = vmatpush1.bf16.msra.mxu0 0
          %1809 = vmatprep.subr.bf16.mxu0 0
          %1810 = vmatpush1.bf16.msra.mxu0 0
          %1811 = vmatprep.subr.bf16.mxu0 0
          %1812 = vmatpush1.bf16.msra.mxu0 0
          %1813 = vmatprep.subr.bf16.mxu0 0
          %1814 = vmatpush1.bf16.msra.mxu0 0
          %1815 = vmatprep.subr.bf16.mxu0 0
          %1816 = vmatpush1.bf16.msra.mxu0 %v1797
          %1817 = vmatprep.subr.bf16.mxu0 0
          %1818 = vmatpush1.bf16.msra.mxu0 %v1796
          %1819 = vmatprep.subr.bf16.mxu0 0
          %1820 = vmatpush2.bf16.msra.mxu0 0
          %1821 = vmatprep.subr.bf16.mxu0 0
          %1822 = vmatpush2.bf16.msra.mxu0 0
          %1823 = vmatprep.subr.bf16.mxu0 0
          %1824 = vmatpush2.bf16.msra.mxu0 0
          %1825 = vmatprep.subr.bf16.mxu0 0
          %1826 = vmatpush2.bf16.msra.mxu0 0
          %1827 = vmatprep.subr.bf16.mxu0 0
          %1828 = vmatpush2.bf16.msra.mxu0 0
          %1829 = vmatprep.subr.bf16.mxu0 0
          %1830 = vmatpush2.bf16.msra.mxu0 0
          %1831 = vmatprep.subr.bf16.mxu0 0
          %1832 = vmatpush2.bf16.msra.mxu0 0
          %1833 = vmatprep.subr.bf16.mxu0 0
          %1834 = vmatpush2.bf16.msra.mxu0 0
          %1835 = vmatprep.mubr.bf16.mxu0 0
          %1836 = vmatmul.mubr.bf16.gmra.mxu0 %v1801
          %v1837 = vpop.f32.mrf.mxu0
          %v1838 = vadd.f32 %v1786, %v1837
          %v1839 = vpop.f32.mrf.mxu0
          %v1840 = vpop.f32.mrf.mxu0
          %v1841 = vpop.f32.mrf.mxu0
          %1842 = vdwg.mxu0
          %v1843 = vmul.f32 %v1838, 0.5
          %v1844 = vmul.f32 %v1838, 0.044715
          %v1845 = vmul.f32 %v1844, %v1838
          %v1846 = vmul.f32 %v1845, %v1838
          %v1847 = vadd.f32 %v1838, %v1846
          %v1848 = vmul.f32 %v1847, 0.7978846
          %v1849 = vtanh.pop %v1848
          %v1850 = vadd.f32 %v1849, 1.0
          %v1851 = vmul.f32 %v1843, %v1850
          %v1852 = vpack.c.bf16 %v1851, %v1851
          %s1853 = smul.u32 %s782, 8
          %s1854 = smul.addr %s1853, 4
          %s1855 = scalar_lea.vmem %s16, %s1854
          %v1856 = vld [vmem:[%s1855] sm:$0xf]
          %v1857 = vld [vmem:[%s1855 + $0x4] sm:$0xf]
          %v1858 = vld [vmem:[%s1855 + $0x8] sm:$0xf]
          %v1859 = vld [vmem:[%s1855 + $0xc] sm:$0xf]
          %v1860 = vld [vmem:[%s1855 + $0x10] sm:$0xf]
          %v1861 = vld [vmem:[%s1855 + $0x14] sm:$0xf]
          %v1862 = vld [vmem:[%s1855 + $0x18] sm:$0xf]
          %v1863 = vld [vmem:[%s1855 + $0x1c] sm:$0xf]
          %s1864 = scalar_lea.vmem %s17, %s782
          %v1865 = vld [vmem:[%s1864] sm:$0x1]
          %v1867 = vlaneseq
          %v1868 = vshrl.u32 %v1867, 7
          %v1869 = vsub.s32 0, %v1868
          %v1870 = vrot.slane %v1865, %v1869
          %v1880 = vunpack.c.l.b16 %v1856
          %v1881 = vunpack.c.l.b16 %v1857
          %v1882 = vunpack.c.l.b16 %v1858
          %v1883 = vunpack.c.l.b16 %v1859
          %v1884 = vunpack.c.l.b16 %v1860
          %v1885 = vunpack.c.l.b16 %v1861
          %v1886 = vunpack.c.l.b16 %v1862
          %v1887 = vunpack.c.l.b16 %v1863
          %v1888 = vpack.c.b16 %v1881, %v1880
          %v1889 = vpack.c.b16 %v1883, %v1882
          %v1890 = vpack.c.b16 %v1885, %v1884
          %v1891 = vpack.c.b16 %v1887, %v1886
          %vm1896 = vcmask 523264
          %v1898 = vsel %vm1896, %v1852, 0
          %1900 = vmatprep.subr.bf16.mxu0 0
          %1901 = vmatpush1.bf16.msra.mxu0 0
          %1902 = vmatprep.subr.bf16.mxu0 0
          %1903 = vmatpush1.bf16.msra.mxu0 0
          %1904 = vmatprep.subr.bf16.mxu0 0
          %1905 = vmatpush1.bf16.msra.mxu0 0
          %1906 = vmatprep.subr.bf16.mxu0 0
          %1907 = vmatpush1.bf16.msra.mxu0 0
          %1908 = vmatprep.subr.bf16.mxu0 0
          %1909 = vmatpush1.bf16.msra.mxu0 %v1891
          %1910 = vmatprep.subr.bf16.mxu0 0
          %1911 = vmatpush1.bf16.msra.mxu0 %v1890
          %1912 = vmatprep.subr.bf16.mxu0 0
          %1913 = vmatpush1.bf16.msra.mxu0 %v1889
          %1914 = vmatprep.subr.bf16.mxu0 0
          %1915 = vmatpush1.bf16.msra.mxu0 %v1888
          %1916 = vmatprep.subr.bf16.mxu0 0
          %1917 = vmatpush2.bf16.msra.mxu0 0
          %1918 = vmatprep.subr.bf16.mxu0 0
          %1919 = vmatpush2.bf16.msra.mxu0 0
          %1920 = vmatprep.subr.bf16.mxu0 0
          %1921 = vmatpush2.bf16.msra.mxu0 0
          %1922 = vmatprep.subr.bf16.mxu0 0
          %1923 = vmatpush2.bf16.msra.mxu0 0
          %1924 = vmatprep.subr.bf16.mxu0 0
          %1925 = vmatpush2.bf16.msra.mxu0 0
          %1926 = vmatprep.subr.bf16.mxu0 0
          %1927 = vmatpush2.bf16.msra.mxu0 0
          %1928 = vmatprep.subr.bf16.mxu0 0
          %1929 = vmatpush2.bf16.msra.mxu0 0
          %1930 = vmatprep.subr.bf16.mxu0 0
          %1931 = vmatpush2.bf16.msra.mxu0 0
          %1932 = vmatprep.mubr.bf16.mxu0 0
          %1933 = vmatmul.mubr.bf16.gmra.mxu0 %v1898
          %v1934 = vpop.f32.mrf.mxu0
          %v1935 = vadd.f32 %v1870, %v1934
          %v1936 = vpop.f32.mrf.mxu0
          %v1937 = vpop.f32.mrf.mxu0
          %v1938 = vpop.f32.mrf.mxu0
          %1939 = vdwg.mxu0
          %v1940 = vadd.f32 %v1772, %v1935
          %s1941 = scalar_lea.vmem %s18, %s782
          %v1942 = vld [vmem:[%s1941] sm:$0x1]
          %s1943 = scalar_lea.vmem %s19, %s782
          %v1944 = vld [vmem:[%s1943] sm:$0x1]
          %v1945 = vsel %vm751, %v1940, 0.0
          %1946 = vadd.xlane.f32.xlu0 %v1945
          %v1947 = vpop.xlane.xlu0 %1946
          %v1948 = vmul.f32 %v1947, %v755
          %v1949 = vsub.f32 %v1940, %v1948
          %v1950 = vmul.f32 %v1949, %v1949
          %v1951 = vsel %vm751, %v1950, 0.0
          %1952 = vadd.xlane.f32.xlu0 %v1951
          %v1953 = vpop.xlane.xlu0 %1952
          %v1954 = vmul.f32 %v1953, %v755
          %v1955 = vadd.f32 %v1954, 1e-12
          %v1956 = vrsqrt.pop %v1955
          %v1957 = vmul.f32 %v1949, %v1956
          %v1959 = vlaneseq
          %v1960 = vshrl.u32 %v1959, 7
          %v1961 = vsub.s32 0, %v1960
          %v1962 = vrot.slane %v1942, %v1961
          %v1964 = vmul.f32 %v1957, %v1962
          %v1966 = vlaneseq
          %v1967 = vshrl.u32 %v1966, 7
          %v1968 = vsub.s32 0, %v1967
          %v1969 = vrot.slane %v1944, %v1968
          %v1971 = vadd.f32 %v1964, %v1969
          %1972 = vst.msk [vmem:[#allocation2] sm:$0xff] %vm751, %v1971
        $region121: #{bert_for_sequence_classification.1} parent=115 // loop_footer
          %s786 = sadd.s32 1, %s782
        $region122: #{bert_for_sequence_classification.1} parent=115 // loop_footer_branch
          %781 = sbr.rel target = $region118
        $region123: #{bert_for_sequence_classification.1} parent=115 // loop_exit
          _
        %v1973 = vld [vmem:[#allocation2] sm:$0x1]
        %v1974 = vpack.c.bf16 %v1973, %v1973
        %v1975 = vld [vmem:[%s20] sm:$0xf]
        %v1976 = vld [vmem:[%s20 + $0x4] sm:$0xf]
        %v1977 = vld [vmem:[%s20 + $0x8] sm:$0xf]
        %v1978 = vld [vmem:[%s20 + $0xc] sm:$0xf]
        %v1979 = vld [vmem:[%s21] sm:$0x1]
        %v1984 = vunpack.c.l.b16 %v1975
        %v1985 = vunpack.c.l.b16 %v1976
        %v1986 = vunpack.c.l.b16 %v1977
        %v1987 = vunpack.c.l.b16 %v1978
        %v1988 = vpack.c.b16 %v1985, %v1984
        %v1989 = vpack.c.b16 %v1987, %v1986
        %v1993 = vsel %vm751, %v1974, 0
        %1995 = vmatprep.subr.bf16.mxu0 0
        %1996 = vmatpush1.bf16.msra.mxu0 0
        %1997 = vmatprep.subr.bf16.mxu0 0
        %1998 = vmatpush1.bf16.msra.mxu0 0
        %1999 = vmatprep.subr.bf16.mxu0 0
        %2000 = vmatpush1.bf16.msra.mxu0 0
        %2001 = vmatprep.subr.bf16.mxu0 0
        %2002 = vmatpush1.bf16.msra.mxu0 0
        %2003 = vmatprep.subr.bf16.mxu0 0
        %2004 = vmatpush1.bf16.msra.mxu0 0
        %2005 = vmatprep.subr.bf16.mxu0 0
        %2006 = vmatpush1.bf16.msra.mxu0 0
        %2007 = vmatprep.subr.bf16.mxu0 0
        %2008 = vmatpush1.bf16.msra.mxu0 %v1989
        %2009 = vmatprep.subr.bf16.mxu0 0
        %2010 = vmatpush1.bf16.msra.mxu0 %v1988
        %2011 = vmatprep.subr.bf16.mxu0 0
        %2012 = vmatpush2.bf16.msra.mxu0 0
        %2013 = vmatprep.subr.bf16.mxu0 0
        %2014 = vmatpush2.bf16.msra.mxu0 0
        %2015 = vmatprep.subr.bf16.mxu0 0
        %2016 = vmatpush2.bf16.msra.mxu0 0
        %2017 = vmatprep.subr.bf16.mxu0 0
        %2018 = vmatpush2.bf16.msra.mxu0 0
        %2019 = vmatprep.subr.bf16.mxu0 0
        %2020 = vmatpush2.bf16.msra.mxu0 0
        %2021 = vmatprep.subr.bf16.mxu0 0
        %2022 = vmatpush2.bf16.msra.mxu0 0
        %2023 = vmatprep.subr.bf16.mxu0 0
        %2024 = vmatpush2.bf16.msra.mxu0 0
        %2025 = vmatprep.subr.bf16.mxu0 0
        %2026 = vmatpush2.bf16.msra.mxu0 0
        %2027 = vmatprep.mubr.bf16.mxu0 0
        %2028 = vmatmul.mubr.bf16.gmra.mxu0 %v1993
        %v2029 = vpop.f32.mrf.mxu0
        %v2030 = vadd.f32 %v1979, %v2029
        %v2031 = vpop.f32.mrf.mxu0
        %v2032 = vpop.f32.mrf.mxu0
        %v2033 = vpop.f32.mrf.mxu0
        %2034 = vdwg.mxu0
        %v2035 = vtanh.pop %v2030
        %v2036 = vpack.c.bf16 %v2035, %v2035
        %v2037 = vld [vmem:[%s22] sm:$0xf]
        %v2038 = vld [vmem:[%s22 + $0x4] sm:$0xf]
        %v2039 = vld [vmem:[%s22 + $0x8] sm:$0xf]
        %v2040 = vld [vmem:[%s22 + $0xc] sm:$0xf]
        %v2041 = vld [vmem:[%s23] sm:$0x1]
        %v2046 = vunpack.c.l.b16 %v2037
        %v2047 = vunpack.c.l.b16 %v2038
        %v2048 = vunpack.c.l.b16 %v2039
        %v2049 = vunpack.c.l.b16 %v2040
        %v2050 = vpack.c.b16 %v2047, %v2046
        %v2051 = vpack.c.b16 %v2049, %v2048
        %v2055 = vsel %vm751, %v2036, 0
        %2057 = vmatprep.subr.bf16.mxu0 0
        %2058 = vmatpush1.bf16.msra.mxu0 0
        %2059 = vmatprep.subr.bf16.mxu0 0
        %2060 = vmatpush1.bf16.msra.mxu0 0
        %2061 = vmatprep.subr.bf16.mxu0 0
        %2062 = vmatpush1.bf16.msra.mxu0 0
        %2063 = vmatprep.subr.bf16.mxu0 0
        %2064 = vmatpush1.bf16.msra.mxu0 0
        %2065 = vmatprep.subr.bf16.mxu0 0
        %2066 = vmatpush1.bf16.msra.mxu0 0
        %2067 = vmatprep.subr.bf16.mxu0 0
        %2068 = vmatpush1.bf16.msra.mxu0 0
        %2069 = vmatprep.subr.bf16.mxu0 0
        %2070 = vmatpush1.bf16.msra.mxu0 %v2051
        %2071 = vmatprep.subr.bf16.mxu0 0
        %2072 = vmatpush1.bf16.msra.mxu0 %v2050
        %2073 = vmatprep.subr.bf16.mxu0 0
        %2074 = vmatpush2.bf16.msra.mxu0 0
        %2075 = vmatprep.subr.bf16.mxu0 0
        %2076 = vmatpush2.bf16.msra.mxu0 0
        %2077 = vmatprep.subr.bf16.mxu0 0
        %2078 = vmatpush2.bf16.msra.mxu0 0
        %2079 = vmatprep.subr.bf16.mxu0 0
        %2080 = vmatpush2.bf16.msra.mxu0 0
        %2081 = vmatprep.subr.bf16.mxu0 0
        %2082 = vmatpush2.bf16.msra.mxu0 0
        %2083 = vmatprep.subr.bf16.mxu0 0
        %2084 = vmatpush2.bf16.msra.mxu0 0
        %2085 = vmatprep.subr.bf16.mxu0 0
        %2086 = vmatpush2.bf16.msra.mxu0 0
        %2087 = vmatprep.subr.bf16.mxu0 0
        %2088 = vmatpush2.bf16.msra.mxu0 0
        %2089 = vmatprep.mubr.bf16.mxu0 0
        %2090 = vmatmul.mubr.bf16.gmra.mxu0 %v2055
        %v2091 = vpop.f32.mrf.mxu0
        %v2092 = vadd.f32 %v2041, %v2091
        %v2093 = vpop.f32.mrf.mxu0
        %v2094 = vpop.f32.mrf.mxu0
        %v2095 = vpop.f32.mrf.mxu0
        %2096 = vdwg.mxu0
        %2097 = vst [vmem:[%s738] sm:$0x1] %v2092
        %s2098 = sand.u32 %s560, 1
        %s2099 = scalar_lea.sflag [#allocation4], %s2098
        %s2100 = sand.u32 %s560, 1
        %s2101 = scalar_lea.vmem [#allocation3], %s2100
        // Predicated region
        $region124: #{bert_for_sequence_classification.1} parent=115 // pred_check
          %p2102 = pneg %p570
        $region125: #{bert_for_sequence_classification.1} parent=115 // pred_check_branch
          %2104 = sbr.rel (%p2102) target = $region127
        $region126: #{bert_for_sequence_classification.1} parent=115 // pred_region
          %s2106 = ssub.s32 16, 16
          %2107 = vsyncadd %s2099, %s2106
          %s2108 = smul.addr %s38, 16
          %s2109 = scalar_lea.hbm %s24, %s2108
          %s2111 = sshll.u32 %s2101, 4
          %s2112 = int_to_ptr.vmem [resolvable:$true] %s2111
          %2114 = dma.vmem_to_hbm [thread:$0]  %s2112, 16, %s2109, %s2099
        $region127: #{bert_for_sequence_classification.1} parent=115 // pred_fallthru
          _
      $region116: #{bert_for_sequence_classification.1} parent=5 // pred_fallthru
        _
      %p2115 = scmp.le.s32.totalorder 2, %s33
      // Predicated region
      $region128: #{bert_for_sequence_classification.1} parent=5 // pred_check
        %p2116 = pneg %p2115
      $region129: #{bert_for_sequence_classification.1} parent=5 // pred_check_branch
        %2118 = sbr.rel (%p2116) target = $region131
      $region130: #{bert_for_sequence_classification.1} parent=5 // pred_region
        %s2119 = ssub.s32 %s33, 2
        // Predicated region
        $region132: #{bert_for_sequence_classification.1} parent=130 // pred_check
          %p2120 = pneg %p576
        $region133: #{bert_for_sequence_classification.1} parent=130 // pred_check_branch
          %2122 = sbr.rel (%p2120) target = $region135
        $region134: #{bert_for_sequence_classification.1} parent=130 // pred_region
          %s2123 = sand.u32 %s561, 1
          %s2124 = scalar_lea.sflag [#allocation4], %s2123
          %s2125 = sand.u32 %s561, 1
          %s2126 = scalar_lea.vmem [#allocation3], %s2125
          %2127 = dma.done %s2124, 16
        $region135: #{bert_for_sequence_classification.1} parent=130 // pred_fallthru
          _
      $region131: #{bert_for_sequence_classification.1} parent=5 // pred_fallthru
        _
    $region6: #{bert_for_sequence_classification.1} parent=1 // loop_footer
      %s37 = sadd.s32 1, %s33
    $region7: #{bert_for_sequence_classification.1} parent=1 // loop_footer_branch
      %32 = sbr.rel target = $region3
    $region8: #{bert_for_sequence_classification.1} parent=1 // loop_exit
      _
    %2128 = vsyncpa [#allocation4], 1
    %s2129 = scalar_lea.sflag [#allocation4], 1
    %2130 = vsyncpa %s2129, 1

</llo_original>
